<compile_context>
chip_gen: v7x
topology: tpu7x:2x2x1
jax: 0.10.0
libtpu: 0.0.40
codegen_flags: <defaults>
</compile_context>

<pallas_src>
import functools

import jax
import jax.numpy as jnp
from jax.experimental import pallas as pl
from jax.experimental.pallas import tpu as pltpu


# ----------------------------------------------------------------------------
# Fused kernel: (normalization-folded) 3x3 stem conv + ReLU + FCOS head
# ----------------------------------------------------------------------------
def _fused_stem_head_kernel(x_ref, ws_ref, bs_ref, wh_ref, bh_ref, o_ref, *, H, W):
    """One grid step == one image.

    x_ref : (1, H+2, W+2, C)  raw image with per-channel-mean halo padding (bf16)
    ws_ref: (9, C, F)         stem conv weights with 1/std folded in       (bf16)
    bs_ref: (1, F)            stem bias with -mean/std folded through W    (f32)
    wh_ref: (F, P)            concat(cls|reg|ctr) 1x1 weights, lane-padded (bf16)
    bh_ref: (1, P)            concat head bias, lane-padded                (f32)
    o_ref : (1, H*W, P)       fused lane-dense head output                 (f32)
    """
    C = x_ref.shape[-1]
    F = ws_ref.shape[-1]

    xb = x_ref[0].astype(jnp.float32)                      # (H+2, W+2, C)

    # 3x3 conv as 9 shifted-window matmuls accumulated in f32 on the MXU.
    acc = jnp.zeros((H * W, F), jnp.float32)
    for t in range(9):                                     # static unroll
        dh, dw = t // 3, t % 3
        win = xb[dh:dh + H, dw:dw + W, :]                  # (H, W, C) static slice
        xs = win.reshape(H * W, C).astype(jnp.bfloat16)    # tile-aligned collapse
        acc = acc + jnp.dot(xs, ws_ref[t], preferred_element_type=jnp.float32)

    feat = jnp.maximum(acc + bs_ref[...], 0.0)             # ReLU; never leaves VMEM

    # Fused head: one lane-dense (F, P=128) matmul instead of 3 narrow ones
    # (nc / 4 / 1 wide outputs would lower to masked partial stores).
    out = jnp.dot(feat.astype(jnp.bfloat16), wh_ref[...],
                  preferred_element_type=jnp.float32) + bh_ref[...]
    o_ref[0] = out.astype(o_ref.dtype)


def fcos_dense_forward(x_pad_nhwc, ws, bs, wh, bh):
    """x_pad_nhwc: (N, H+2, W+2, C); returns (N, H*W, P) lane-dense head output."""
    N, Hp, Wp, C = x_pad_nhwc.shape
    H, W = Hp - 2, Wp - 2
    F = ws.shape[-1]
    P = wh.shape[-1]

    kernel = functools.partial(_fused_stem_head_kernel, H=H, W=W)
    return pl.pallas_call(
        kernel,
        out_shape=jax.ShapeDtypeStruct((N, H * W, P), jnp.float32),
        grid=(N,),
        in_specs=[
            pl.BlockSpec((1, Hp, Wp, C), lambda n: (n, 0, 0, 0)),
            pl.BlockSpec((9, C, F), lambda n: (0, 0, 0)),
            pl.BlockSpec((1, F), lambda n: (0, 0)),
            pl.BlockSpec((F, P), lambda n: (0, 0)),
            pl.BlockSpec((1, P), lambda n: (0, 0)),
        ],
        out_specs=pl.BlockSpec((1, H * W, P), lambda n: (n, 0, 0)),
        compiler_params=pltpu.CompilerParams(
            # one image per step; "parallel" lets v7x shard the 2 images over
            # its 2 TensorCores (no effect on v5e/v6e).
            dimension_semantics=("parallel",),
        ),
    )(x_pad_nhwc, ws, bs, wh, bh)


# ----------------------------------------------------------------------------
# Glue (plain JAX): layout, normalization folding, head-weight concatenation
# ----------------------------------------------------------------------------
def make_params(key, c_in, c_feat, num_classes):
    ks = jax.random.split(key, 4)
    return {
        "stem_w": 0.05 * jax.random.normal(ks[0], (9, c_in, c_feat), jnp.float32),
        "stem_b": jnp.zeros((1, c_feat), jnp.float32),
        "cls_w": 0.05 * jax.random.normal(ks[1], (c_feat, num_classes), jnp.float32),
        "cls_b": jnp.zeros((1, num_classes), jnp.float32),
        "reg_w": 0.05 * jax.random.normal(ks[2], (c_feat, 4), jnp.float32),
        "reg_b": jnp.zeros((1, 4), jnp.float32),
        "ctr_w": 0.05 * jax.random.normal(ks[3], (c_feat, 1), jnp.float32),
        "ctr_b": jnp.zeros((1, 1), jnp.float32),
        # cfg.MODEL.PIXEL_MEAN / PIXEL_STD analogues (per channel)
        "pixel_mean": jnp.array([103.53, 116.28, 123.675], jnp.float32)[:c_in],
        "pixel_std": jnp.array([57.375, 57.12, 58.395], jnp.float32)[:c_in],
    }


@jax.jit
def fcos_forward_onnx(x_nchw, params):
    """Equivalent of FCOS.forward_onnx: returns (box_cls, box_regression, centerness)."""
    N, C, H, W = x_nchw.shape
    x_nhwc = jnp.transpose(x_nchw, (0, 2, 3, 1))

    mean = params["pixel_mean"]                        # (C,)
    inv_std = 1.0 / params["pixel_std"]                # (C,)

    # Halo-pad the RAW image with pixel_mean: after folding the normalization
    # into the weights this reproduces zero-padding of the normalized image
    # exactly ((mean - mean) * inv_std == 0).
    x_pad = jnp.broadcast_to(mean, (N, H + 2, W + 2, C))
    x_pad = x_pad.at[:, 1:-1, 1:-1, :].set(x_nhwc).astype(jnp.bfloat16)

    # Fold (x - mean) * inv_std into the stem conv (exact: conv is linear).
    ws = params["stem_w"]                              # (9, C, F)
    ws_folded = (ws * inv_std[None, :, None]).astype(jnp.bfloat16)
    bs_folded = params["stem_b"] - jnp.einsum("c,tcf->f", mean * inv_std, ws)[None, :]

    # Concatenate cls / reg / ctr 1x1 convs into one lane-dense projection.
    nc = params["cls_w"].shape[1]
    n_out = nc + 4 + 1
    P = max(128, ((n_out + 127) // 128) * 128)
    wh = jnp.concatenate([params["cls_w"], params["reg_w"], params["ctr_w"]], axis=1)
    bh = jnp.concatenate([params["cls_b"], params["reg_b"], params["ctr_b"]], axis=1)
    wh = jnp.pad(wh, ((0, 0), (0, P - n_out))).astype(jnp.bfloat16)
    bh = jnp.pad(bh, ((0, 0), (0, P - n_out)))

    out = fcos_dense_forward(x_pad, ws_folded, bs_folded, wh, bh)   # (N, H*W, P)
    out = out.reshape(N, H, W, P)

    # Slice the fused slab and convert to PyTorch's NCHW convention at the end.
    box_cls = jnp.transpose(out[..., :nc], (0, 3, 1, 2))
    box_regression = jnp.transpose(out[..., nc:nc + 4], (0, 3, 1, 2))
    centerness = jnp.transpose(out[..., nc + 4:nc + 5], (0, 3, 1, 2))
    return box_cls, box_regression, centerness


# ----------------------------------------------------------------------------
# Pure-JAX f32 reference of the same dense path (for a sanity check)
# ----------------------------------------------------------------------------
def _reference(x_nchw, params):
    N, C, H, W = x_nchw.shape
    x = jnp.transpose(x_nchw, (0, 2, 3, 1))
    z = (x - params["pixel_mean"]) / params["pixel_std"]
    zp = jnp.pad(z, ((0, 0), (1, 1), (1, 1), (0, 0)))
    F = params["stem_w"].shape[-1]
    feat = jnp.zeros((N, H, W, F), jnp.float32)
    for t in range(9):
        dh, dw = t // 3, t % 3
        feat += jnp.einsum("nhwc,cf->nhwf", zp[:, dh:dh + H, dw:dw + W, :],
                           params["stem_w"][t])
    feat = jnp.maximum(feat + params["stem_b"][0], 0.0)
    to_nchw = lambda a: jnp.transpose(a, (0, 3, 1, 2))
    cls = jnp.einsum("nhwf,fk->nhwk", feat, params["cls_w"]) + params["cls_b"][0]
    reg = jnp.einsum("nhwf,fk->nhwk", feat, params["reg_w"]) + params["reg_b"][0]
    ctr = jnp.einsum("nhwf,fk->nhwk", feat, params["ctr_w"]) + params["ctr_b"][0]
    return to_nchw(cls), to_nchw(reg), to_nchw(ctr)


if __name__ == "__main__":
    key = jax.random.PRNGKey(0)
    k_img, k_par = jax.random.split(key)

    N, C_IN, H, W = 2, 3, 16, 16            # small image batch (NCHW)
    C_FEAT, NUM_CLASSES = 64, 8

    x = 255.0 * jax.random.uniform(k_img, (N, C_IN, H, W), jnp.float32)
    params = make_params(k_par, C_IN, C_FEAT, NUM_CLASSES)

    box_cls, box_reg, centerness = fcos_forward_onnx(x, params)
    jax.block_until_ready((box_cls, box_reg, centerness))

    assert box_cls.shape == (N, NUM_CLASSES, H, W)
    assert box_reg.shape == (N, 4, H, W)
    assert centerness.shape == (N, 1, H, W)

    # Tolerance check vs the f32 reference (bf16 MXU inputs => ~1e-3 abs error).
    ref = _reference(x, params)
    for got, want in zip((box_cls, box_reg, centerness), ref):
        err = float(jnp.max(jnp.abs(got - want)))
        assert err < 5e-2, f"max abs err {err}"

    print("KERNEL_OK")
</pallas_src>

<mosaic_0001>
module attributes {stable_mosaic.version = 11 : i64} {
  func.func @_fused_stem_head_kernel(%arg0: i32, %arg1: memref<1x18x18x3xbf16, #tpu.memory_space<vmem>>, %arg2: memref<9x3x64xbf16, #tpu.memory_space<vmem>>, %arg3: memref<1x64xf32, #tpu.memory_space<vmem>>, %arg4: memref<64x128xbf16, #tpu.memory_space<vmem>>, %arg5: memref<1x128xf32, #tpu.memory_space<vmem>>, %arg6: memref<1x256x128xf32, #tpu.memory_space<vmem>>) attributes {dimension_semantics = [#tpu.dimension_semantics<parallel>], iteration_bounds = array<i64: 2>, scalar_prefetch = 0 : i64, scratch_operands = 0 : i64, tpu.core_type = #tpu.core_type<tc>, window_params = [{transform_indices = @transform_0, window_bounds = array<i64: 1, 18, 18, 3>}, {pipeline_mode = #tpu.pipeline_mode<synchronous>, transform_indices = @transform_1, window_bounds = array<i64: 9, 3, 64>}, {pipeline_mode = #tpu.pipeline_mode<synchronous>, transform_indices = @transform_2, window_bounds = array<i64: 1, 64>}, {pipeline_mode = #tpu.pipeline_mode<synchronous>, transform_indices = @transform_3, window_bounds = array<i64: 64, 128>}, {pipeline_mode = #tpu.pipeline_mode<synchronous>, transform_indices = @transform_4, window_bounds = array<i64: 1, 128>}, {transform_indices = @transform_5, window_bounds = array<i64: 1, 256, 128>}]} {
    %c0 = arith.constant 0 : index
    %c0_0 = arith.constant 0 : index
    %c0_1 = arith.constant 0 : index
    %c0_2 = arith.constant 0 : index
    %0 = vector.load %arg1[%c0, %c0_0, %c0_1, %c0_2] : memref<1x18x18x3xbf16, #tpu.memory_space<vmem>>, vector<1x18x18x3xbf16>
    %1 = vector.shape_cast %0 : vector<1x18x18x3xbf16> to vector<18x18x3xbf16>
    %2 = arith.extf %1 : vector<18x18x3xbf16> to vector<18x18x3xf32>
    %cst = arith.constant 0.000000e+00 : f32
    %3 = vector.broadcast %cst : f32 to vector<256x64xf32>
    %4 = vector.extract_strided_slice %2 {offsets = [0, 0, 0], sizes = [16, 16, 3], strides = [1, 1, 1]} : vector<18x18x3xf32> to vector<16x16x3xf32>
    %5 = vector.shape_cast %4 : vector<16x16x3xf32> to vector<256x3xf32>
    %6 = arith.truncf %5 : vector<256x3xf32> to vector<256x3xbf16>
    %c0_3 = arith.constant 0 : index
    %c0_4 = arith.constant 0 : index
    %c0_5 = arith.constant 0 : index
    %7 = vector.load %arg2[%c0_3, %c0_4, %c0_5] : memref<9x3x64xbf16, #tpu.memory_space<vmem>>, vector<1x3x64xbf16>
    %8 = vector.shape_cast %7 : vector<1x3x64xbf16> to vector<3x64xbf16>
    %cst_6 = arith.constant dense<0.000000e+00> : vector<256x64xf32>
    %9 = tpu.matmul %6, %8, %cst_6 {dimension_numbers = #tpu.dot_dimension_numbers<[1], [0], [0], [1], [0, 0, 1, 1], [], []>} : vector<256x3xbf16>, vector<3x64xbf16>, vector<256x64xf32> -> vector<256x64xf32>
    %10 = arith.addf %3, %9 : vector<256x64xf32>
    %11 = vector.extract_strided_slice %2 {offsets = [0, 1, 0], sizes = [16, 16, 3], strides = [1, 1, 1]} : vector<18x18x3xf32> to vector<16x16x3xf32>
    %12 = vector.shape_cast %11 : vector<16x16x3xf32> to vector<256x3xf32>
    %13 = arith.truncf %12 : vector<256x3xf32> to vector<256x3xbf16>
    %c1 = arith.constant 1 : index
    %c0_7 = arith.constant 0 : index
    %c0_8 = arith.constant 0 : index
    %14 = vector.load %arg2[%c1, %c0_7, %c0_8] : memref<9x3x64xbf16, #tpu.memory_space<vmem>>, vector<1x3x64xbf16>
    %15 = vector.shape_cast %14 : vector<1x3x64xbf16> to vector<3x64xbf16>
    %cst_9 = arith.constant dense<0.000000e+00> : vector<256x64xf32>
    %16 = tpu.matmul %13, %15, %cst_9 {dimension_numbers = #tpu.dot_dimension_numbers<[1], [0], [0], [1], [0, 0, 1, 1], [], []>} : vector<256x3xbf16>, vector<3x64xbf16>, vector<256x64xf32> -> vector<256x64xf32>
    %17 = arith.addf %10, %16 : vector<256x64xf32>
    %18 = vector.extract_strided_slice %2 {offsets = [0, 2, 0], sizes = [16, 16, 3], strides = [1, 1, 1]} : vector<18x18x3xf32> to vector<16x16x3xf32>
    %19 = vector.shape_cast %18 : vector<16x16x3xf32> to vector<256x3xf32>
    %20 = arith.truncf %19 : vector<256x3xf32> to vector<256x3xbf16>
    %c2 = arith.constant 2 : index
    %c0_10 = arith.constant 0 : index
    %c0_11 = arith.constant 0 : index
    %21 = vector.load %arg2[%c2, %c0_10, %c0_11] : memref<9x3x64xbf16, #tpu.memory_space<vmem>>, vector<1x3x64xbf16>
    %22 = vector.shape_cast %21 : vector<1x3x64xbf16> to vector<3x64xbf16>
    %cst_12 = arith.constant dense<0.000000e+00> : vector<256x64xf32>
    %23 = tpu.matmul %20, %22, %cst_12 {dimension_numbers = #tpu.dot_dimension_numbers<[1], [0], [0], [1], [0, 0, 1, 1], [], []>} : vector<256x3xbf16>, vector<3x64xbf16>, vector<256x64xf32> -> vector<256x64xf32>
    %24 = arith.addf %17, %23 : vector<256x64xf32>
    %25 = vector.extract_strided_slice %2 {offsets = [1, 0, 0], sizes = [16, 16, 3], strides = [1, 1, 1]} : vector<18x18x3xf32> to vector<16x16x3xf32>
    %26 = vector.shape_cast %25 : vector<16x16x3xf32> to vector<256x3xf32>
    %27 = arith.truncf %26 : vector<256x3xf32> to vector<256x3xbf16>
    %c3 = arith.constant 3 : index
    %c0_13 = arith.constant 0 : index
    %c0_14 = arith.constant 0 : index
    %28 = vector.load %arg2[%c3, %c0_13, %c0_14] : memref<9x3x64xbf16, #tpu.memory_space<vmem>>, vector<1x3x64xbf16>
    %29 = vector.shape_cast %28 : vector<1x3x64xbf16> to vector<3x64xbf16>
    %cst_15 = arith.constant dense<0.000000e+00> : vector<256x64xf32>
    %30 = tpu.matmul %27, %29, %cst_15 {dimension_numbers = #tpu.dot_dimension_numbers<[1], [0], [0], [1], [0, 0, 1, 1], [], []>} : vector<256x3xbf16>, vector<3x64xbf16>, vector<256x64xf32> -> vector<256x64xf32>
    %31 = arith.addf %24, %30 : vector<256x64xf32>
    %32 = vector.extract_strided_slice %2 {offsets = [1, 1, 0], sizes = [16, 16, 3], strides = [1, 1, 1]} : vector<18x18x3xf32> to vector<16x16x3xf32>
    %33 = vector.shape_cast %32 : vector<16x16x3xf32> to vector<256x3xf32>
    %34 = arith.truncf %33 : vector<256x3xf32> to vector<256x3xbf16>
    %c4 = arith.constant 4 : index
    %c0_16 = arith.constant 0 : index
    %c0_17 = arith.constant 0 : index
    %35 = vector.load %arg2[%c4, %c0_16, %c0_17] : memref<9x3x64xbf16, #tpu.memory_space<vmem>>, vector<1x3x64xbf16>
    %36 = vector.shape_cast %35 : vector<1x3x64xbf16> to vector<3x64xbf16>
    %cst_18 = arith.constant dense<0.000000e+00> : vector<256x64xf32>
    %37 = tpu.matmul %34, %36, %cst_18 {dimension_numbers = #tpu.dot_dimension_numbers<[1], [0], [0], [1], [0, 0, 1, 1], [], []>} : vector<256x3xbf16>, vector<3x64xbf16>, vector<256x64xf32> -> vector<256x64xf32>
    %38 = arith.addf %31, %37 : vector<256x64xf32>
    %39 = vector.extract_strided_slice %2 {offsets = [1, 2, 0], sizes = [16, 16, 3], strides = [1, 1, 1]} : vector<18x18x3xf32> to vector<16x16x3xf32>
    %40 = vector.shape_cast %39 : vector<16x16x3xf32> to vector<256x3xf32>
    %41 = arith.truncf %40 : vector<256x3xf32> to vector<256x3xbf16>
    %c5 = arith.constant 5 : index
    %c0_19 = arith.constant 0 : index
    %c0_20 = arith.constant 0 : index
    %42 = vector.load %arg2[%c5, %c0_19, %c0_20] : memref<9x3x64xbf16, #tpu.memory_space<vmem>>, vector<1x3x64xbf16>
    %43 = vector.shape_cast %42 : vector<1x3x64xbf16> to vector<3x64xbf16>
    %cst_21 = arith.constant dense<0.000000e+00> : vector<256x64xf32>
    %44 = tpu.matmul %41, %43, %cst_21 {dimension_numbers = #tpu.dot_dimension_numbers<[1], [0], [0], [1], [0, 0, 1, 1], [], []>} : vector<256x3xbf16>, vector<3x64xbf16>, vector<256x64xf32> -> vector<256x64xf32>
    %45 = arith.addf %38, %44 : vector<256x64xf32>
    %46 = vector.extract_strided_slice %2 {offsets = [2, 0, 0], sizes = [16, 16, 3], strides = [1, 1, 1]} : vector<18x18x3xf32> to vector<16x16x3xf32>
    %47 = vector.shape_cast %46 : vector<16x16x3xf32> to vector<256x3xf32>
    %48 = arith.truncf %47 : vector<256x3xf32> to vector<256x3xbf16>
    %c6 = arith.constant 6 : index
    %c0_22 = arith.constant 0 : index
    %c0_23 = arith.constant 0 : index
    %49 = vector.load %arg2[%c6, %c0_22, %c0_23] : memref<9x3x64xbf16, #tpu.memory_space<vmem>>, vector<1x3x64xbf16>
    %50 = vector.shape_cast %49 : vector<1x3x64xbf16> to vector<3x64xbf16>
    %cst_24 = arith.constant dense<0.000000e+00> : vector<256x64xf32>
    %51 = tpu.matmul %48, %50, %cst_24 {dimension_numbers = #tpu.dot_dimension_numbers<[1], [0], [0], [1], [0, 0, 1, 1], [], []>} : vector<256x3xbf16>, vector<3x64xbf16>, vector<256x64xf32> -> vector<256x64xf32>
    %52 = arith.addf %45, %51 : vector<256x64xf32>
    %53 = vector.extract_strided_slice %2 {offsets = [2, 1, 0], sizes = [16, 16, 3], strides = [1, 1, 1]} : vector<18x18x3xf32> to vector<16x16x3xf32>
    %54 = vector.shape_cast %53 : vector<16x16x3xf32> to vector<256x3xf32>
    %55 = arith.truncf %54 : vector<256x3xf32> to vector<256x3xbf16>
    %c7 = arith.constant 7 : index
    %c0_25 = arith.constant 0 : index
    %c0_26 = arith.constant 0 : index
    %56 = vector.load %arg2[%c7, %c0_25, %c0_26] : memref<9x3x64xbf16, #tpu.memory_space<vmem>>, vector<1x3x64xbf16>
    %57 = vector.shape_cast %56 : vector<1x3x64xbf16> to vector<3x64xbf16>
    %cst_27 = arith.constant dense<0.000000e+00> : vector<256x64xf32>
    %58 = tpu.matmul %55, %57, %cst_27 {dimension_numbers = #tpu.dot_dimension_numbers<[1], [0], [0], [1], [0, 0, 1, 1], [], []>} : vector<256x3xbf16>, vector<3x64xbf16>, vector<256x64xf32> -> vector<256x64xf32>
    %59 = arith.addf %52, %58 : vector<256x64xf32>
    %60 = vector.extract_strided_slice %2 {offsets = [2, 2, 0], sizes = [16, 16, 3], strides = [1, 1, 1]} : vector<18x18x3xf32> to vector<16x16x3xf32>
    %61 = vector.shape_cast %60 : vector<16x16x3xf32> to vector<256x3xf32>
    %62 = arith.truncf %61 : vector<256x3xf32> to vector<256x3xbf16>
    %c8 = arith.constant 8 : index
    %c0_28 = arith.constant 0 : index
    %c0_29 = arith.constant 0 : index
    %63 = vector.load %arg2[%c8, %c0_28, %c0_29] : memref<9x3x64xbf16, #tpu.memory_space<vmem>>, vector<1x3x64xbf16>
    %64 = vector.shape_cast %63 : vector<1x3x64xbf16> to vector<3x64xbf16>
    %cst_30 = arith.constant dense<0.000000e+00> : vector<256x64xf32>
    %65 = tpu.matmul %62, %64, %cst_30 {dimension_numbers = #tpu.dot_dimension_numbers<[1], [0], [0], [1], [0, 0, 1, 1], [], []>} : vector<256x3xbf16>, vector<3x64xbf16>, vector<256x64xf32> -> vector<256x64xf32>
    %66 = arith.addf %59, %65 : vector<256x64xf32>
    %c0_31 = arith.constant 0 : index
    %c0_32 = arith.constant 0 : index
    %67 = vector.load %arg3[%c0_31, %c0_32] : memref<1x64xf32, #tpu.memory_space<vmem>>, vector<1x64xf32>
    %68 = vector.broadcast %67 : vector<1x64xf32> to vector<256x64xf32>
    %69 = arith.addf %66, %68 : vector<256x64xf32>
    %cst_33 = arith.constant 0.000000e+00 : f32
    %70 = vector.broadcast %cst_33 : f32 to vector<256x64xf32>
    %71 = arith.maximumf %69, %70 : vector<256x64xf32>
    %72 = arith.truncf %71 : vector<256x64xf32> to vector<256x64xbf16>
    %c0_34 = arith.constant 0 : index
    %c0_35 = arith.constant 0 : index
    %73 = vector.load %arg4[%c0_34, %c0_35] : memref<64x128xbf16, #tpu.memory_space<vmem>>, vector<64x128xbf16>
    %cst_36 = arith.constant dense<0.000000e+00> : vector<256x128xf32>
    %74 = tpu.matmul %72, %73, %cst_36 {dimension_numbers = #tpu.dot_dimension_numbers<[1], [0], [0], [1], [0, 0, 1, 1], [], []>} : vector<256x64xbf16>, vector<64x128xbf16>, vector<256x128xf32> -> vector<256x128xf32>
    %c0_37 = arith.constant 0 : index
    %c0_38 = arith.constant 0 : index
    %75 = vector.load %arg5[%c0_37, %c0_38] : memref<1x128xf32, #tpu.memory_space<vmem>>, vector<1x128xf32>
    %76 = vector.broadcast %75 : vector<1x128xf32> to vector<256x128xf32>
    %77 = arith.addf %74, %76 : vector<256x128xf32>
    %c0_39 = arith.constant 0 : index
    %c0_40 = arith.constant 0 : index
    %c0_41 = arith.constant 0 : index
    %78 = vector.load %arg6[%c0_39, %c0_40, %c0_41] : memref<1x256x128xf32, #tpu.memory_space<vmem>>, vector<1x256x128xf32>
    %79 = vector.shape_cast %78 : vector<1x256x128xf32> to vector<256x128xf32>
    %80 = vector.shape_cast %77 : vector<256x128xf32> to vector<1x256x128xf32>
    tpu.vector_store %arg6[%c0_39, %c0_40, %c0_41], %80 {strides = array<i32>} : memref<1x256x128xf32, #tpu.memory_space<vmem>>, vector<1x256x128xf32>,
    return
  }
  func.func @transform_0(%arg0: i32) -> (i32, i32, i32, i32) {
    %c0_i32 = arith.constant 0 : i32
    %c0_i32_0 = arith.constant 0 : i32
    %c0_i32_1 = arith.constant 0 : i32
    %c0_i32_2 = arith.constant 0 : i32
    return %arg0, %c0_i32, %c0_i32_0, %c0_i32_1 : i32, i32, i32, i32
  }
  func.func @transform_1(%arg0: i32) -> (i32, i32, i32) {
    %c0_i32 = arith.constant 0 : i32
    %c0_i32_0 = arith.constant 0 : i32
    %c0_i32_1 = arith.constant 0 : i32
    %c0_i32_2 = arith.constant 0 : i32
    return %c0_i32, %c0_i32_0, %c0_i32_1 : i32, i32, i32
  }
  func.func @transform_2(%arg0: i32) -> (i32, i32) {
    %c0_i32 = arith.constant 0 : i32
    %c0_i32_0 = arith.constant 0 : i32
    %c0_i32_1 = arith.constant 0 : i32
    return %c0_i32, %c0_i32_0 : i32, i32
  }
  func.func @transform_3(%arg0: i32) -> (i32, i32) {
    %c0_i32 = arith.constant 0 : i32
    %c0_i32_0 = arith.constant 0 : i32
    %c0_i32_1 = arith.constant 0 : i32
    return %c0_i32, %c0_i32_0 : i32, i32
  }
  func.func @transform_4(%arg0: i32) -> (i32, i32) {
    %c0_i32 = arith.constant 0 : i32
    %c0_i32_0 = arith.constant 0 : i32
    %c0_i32_1 = arith.constant 0 : i32
    return %c0_i32, %c0_i32_0 : i32, i32
  }
  func.func @transform_5(%arg0: i32) -> (i32, i32, i32) {
    %c0_i32 = arith.constant 0 : i32
    %c0_i32_0 = arith.constant 0 : i32
    %c0_i32_1 = arith.constant 0 : i32
    return %arg0, %c0_i32, %c0_i32_0 : i32, i32, i32
  }
}

</mosaic_0001>

<llo_original>
// kernel: fcos_forward_onnx.1
$region0: #{fcos_forward_onnx.1}
  #allocation0 [shape = 'u32[]', space=smem, size = 0x4, offset = 0x4, fixed_abs, tag = 'smem constant byte address 0x4 - core index']
  #allocation1 [shape = 'u32[144,128]{1,0:T(1,128)}', space=vmem, size = 0x12000, scoped, tag = 'internal scratch']
  %s0 = inlined_call_operand.vmem [shape: bf16[2,18,18,3], index: 0, kind: input, shape index: {}]
  %s1 = inlined_call_operand.vmem [shape: bf16[9,3,64], index: 1, kind: input, shape index: {}]
  %s2 = inlined_call_operand.vmem [shape: f32[1,64], index: 2, kind: input, shape index: {}]
  %s3 = inlined_call_operand.vmem [shape: bf16[64,128], index: 3, kind: input, shape index: {}]
  %s4 = inlined_call_operand.vmem [shape: f32[1,128], index: 4, kind: input, shape index: {}]
  %s5 = inlined_call_operand.vmem [shape: f32[2,256,128], index: 5, kind: output, shape index: {}]
  %s6 = sld [smem:[#allocation0]]
  $region53: #{fcos_forward_onnx.1} parent=0
    _
  %s8 = ssub.s32 1, %s6
  %s9 = scalar_select 0, %s8, %s6
  loop: start=0, step=1, limit=4
  $region2: #{fcos_forward_onnx.1} parent=0 // loop_pre_header
    _
  $region3: #{fcos_forward_onnx.1} parent=0 // loop_header
    %s11 = sphi 0, %s15
    %p12 = scmp.ge.s32.totalorder %s11, 4
    %s21 = sphi 0, %s23
    %s24 = sphi 0, %s21
    %s25 = sphi 0, %s24
    %s41 = sphi 0, %s25
    %s45 = sphi 0, %s45
    %s47 = sphi 0, %s45
    %s48 = sphi 0, %s47
    %s62 = sphi 0, %s48
    %s66 = sphi 0, %s66
    %s68 = sphi 0, %s66
    %s69 = sphi 0, %s68
    %s83 = sphi 0, %s69
    %s87 = sphi 0, %s87
    %s89 = sphi 0, %s87
    %s90 = sphi 0, %s89
    %s104 = sphi 0, %s90
    %s108 = sphi 0, %s108
    %s110 = sphi 0, %s108
    %s111 = sphi 0, %s110
    %s125 = sphi 0, %s111
    %s131 = sphi 0, %s133
    %s134 = sphi 0, %s131
    %s135 = sphi 0, %s134
    %s151 = sphi 0, %s135
  $region4: #{fcos_forward_onnx.1} parent=0 // loop_header_branch
    %14 = sbr.rel (%p12) target = $region8
  $region5: #{fcos_forward_onnx.1} parent=0 // loop_body
    %s16 = ssub.s32 %s11, 1
    %s17 = ssub.s32 %s11, 2
    %s18 = sadd.s32 %s11, 1
    %s19 = ssub.s32 %s11, %s18
    %p20 = scmp.eq.s32.totalorder %s19, 0
    %s22 = sadd.s32 %s21, 1
    %s23 = scalar_select %p20, %s21, %s22
    %p26 = pneg %p20
    %p27 = scmp.eq.s32.totalorder %s11, 1
    %p28 = por %p26, %p27
    %p29 = scmp.ne.s32.totalorder %s21, %s24
    %p30 = scmp.eq.s32.totalorder %s11, 0
    %p31 = por %p29, %p30
    %p32 = scmp.ne.s32.totalorder %s21, %s24
    %p33 = scmp.eq.s32.totalorder %s16, 1
    %p34 = por %p32, %p33
    %p35 = scmp.ne.s32.totalorder %s24, %s25
    %p36 = scmp.eq.s32.totalorder %s16, 0
    %p37 = por %p35, %p36
    %p38 = scmp.ne.s32.totalorder %s24, %s25
    %p39 = scmp.eq.s32.totalorder %s17, 1
    %p40 = por %p38, %p39
    %p42 = scmp.ne.s32.totalorder %s25, %s41
    %p43 = scmp.eq.s32.totalorder %s17, 0
    %p44 = por %p42, %p43
    %s46 = sadd.s32 %s45, 1
    %p49 = scmp.eq.s32.totalorder %s11, 1
    %p50 = scmp.ne.s32.totalorder %s45, %s47
    %p51 = scmp.eq.s32.totalorder %s11, 0
    %p52 = por %p50, %p51
    %p53 = scmp.ne.s32.totalorder %s45, %s47
    %p54 = scmp.eq.s32.totalorder %s16, 1
    %p55 = por %p53, %p54
    %p56 = scmp.ne.s32.totalorder %s47, %s48
    %p57 = scmp.eq.s32.totalorder %s16, 0
    %p58 = por %p56, %p57
    %p59 = scmp.ne.s32.totalorder %s47, %s48
    %p60 = scmp.eq.s32.totalorder %s17, 1
    %p61 = por %p59, %p60
    %p63 = scmp.ne.s32.totalorder %s48, %s62
    %p64 = scmp.eq.s32.totalorder %s17, 0
    %p65 = por %p63, %p64
    %s67 = sadd.s32 %s66, 1
    %p70 = scmp.eq.s32.totalorder %s11, 1
    %p71 = scmp.ne.s32.totalorder %s66, %s68
    %p72 = scmp.eq.s32.totalorder %s11, 0
    %p73 = por %p71, %p72
    %p74 = scmp.ne.s32.totalorder %s66, %s68
    %p75 = scmp.eq.s32.totalorder %s16, 1
    %p76 = por %p74, %p75
    %p77 = scmp.ne.s32.totalorder %s68, %s69
    %p78 = scmp.eq.s32.totalorder %s16, 0
    %p79 = por %p77, %p78
    %p80 = scmp.ne.s32.totalorder %s68, %s69
    %p81 = scmp.eq.s32.totalorder %s17, 1
    %p82 = por %p80, %p81
    %p84 = scmp.ne.s32.totalorder %s69, %s83
    %p85 = scmp.eq.s32.totalorder %s17, 0
    %p86 = por %p84, %p85
    %s88 = sadd.s32 %s87, 1
    %p91 = scmp.eq.s32.totalorder %s11, 1
    %p92 = scmp.ne.s32.totalorder %s87, %s89
    %p93 = scmp.eq.s32.totalorder %s11, 0
    %p94 = por %p92, %p93
    %p95 = scmp.ne.s32.totalorder %s87, %s89
    %p96 = scmp.eq.s32.totalorder %s16, 1
    %p97 = por %p95, %p96
    %p98 = scmp.ne.s32.totalorder %s89, %s90
    %p99 = scmp.eq.s32.totalorder %s16, 0
    %p100 = por %p98, %p99
    %p101 = scmp.ne.s32.totalorder %s89, %s90
    %p102 = scmp.eq.s32.totalorder %s17, 1
    %p103 = por %p101, %p102
    %p105 = scmp.ne.s32.totalorder %s90, %s104
    %p106 = scmp.eq.s32.totalorder %s17, 0
    %p107 = por %p105, %p106
    %s109 = sadd.s32 %s108, 1
    %p112 = scmp.eq.s32.totalorder %s11, 1
    %p113 = scmp.ne.s32.totalorder %s108, %s110
    %p114 = scmp.eq.s32.totalorder %s11, 0
    %p115 = por %p113, %p114
    %p116 = scmp.ne.s32.totalorder %s108, %s110
    %p117 = scmp.eq.s32.totalorder %s16, 1
    %p118 = por %p116, %p117
    %p119 = scmp.ne.s32.totalorder %s110, %s111
    %p120 = scmp.eq.s32.totalorder %s16, 0
    %p121 = por %p119, %p120
    %p122 = scmp.ne.s32.totalorder %s110, %s111
    %p123 = scmp.eq.s32.totalorder %s17, 1
    %p124 = por %p122, %p123
    %p126 = scmp.ne.s32.totalorder %s111, %s125
    %p127 = scmp.eq.s32.totalorder %s17, 0
    %p128 = por %p126, %p127
    %s129 = ssub.s32 %s11, %s18
    %p130 = scmp.eq.s32.totalorder %s129, 0
    %s132 = sadd.s32 %s131, 1
    %s133 = scalar_select %p130, %s131, %s132
    %p136 = pneg %p130
    %p137 = scmp.eq.s32.totalorder %s11, 1
    %p138 = por %p136, %p137
    %p139 = scmp.ne.s32.totalorder %s131, %s134
    %p140 = scmp.eq.s32.totalorder %s11, 0
    %p141 = por %p139, %p140
    %p142 = scmp.ne.s32.totalorder %s131, %s134
    %p143 = scmp.eq.s32.totalorder %s16, 1
    %p144 = por %p142, %p143
    %p145 = scmp.ne.s32.totalorder %s134, %s135
    %p146 = scmp.eq.s32.totalorder %s16, 0
    %p147 = por %p145, %p146
    %p148 = scmp.ne.s32.totalorder %s134, %s135
    %p149 = scmp.eq.s32.totalorder %s17, 1
    %p150 = por %p148, %p149
    %p152 = scmp.ne.s32.totalorder %s135, %s151
    %p153 = scmp.eq.s32.totalorder %s17, 0
    %p154 = por %p152, %p153
    %p155 = scmp.le.s32.totalorder 1, %s11
    %p156 = scmp.lt.s32.totalorder %s11, 3
    %p157 = pnand %p155, %p156
    %p158 = pneg %p157
    // Predicated region
    $region9: #{fcos_forward_onnx.1} parent=5 // pred_check
      _
    $region10: #{fcos_forward_onnx.1} parent=5 // pred_check_branch
      %160 = sbr.rel (%p157) target = $region12
    $region11: #{fcos_forward_onnx.1} parent=5 // pred_region
      %s161 = ssub.s32 %s11, 1
      // Predicated region
      $region13: #{fcos_forward_onnx.1} parent=11 // pred_check
        %p162 = pneg %p58
      $region14: #{fcos_forward_onnx.1} parent=11 // pred_check_branch
        %164 = sbr.rel (%p162) target = $region16
      $region15: #{fcos_forward_onnx.1} parent=11 // pred_region
        _
      $region16: #{fcos_forward_onnx.1} parent=11 // pred_fallthru
        _
      // Predicated region
      $region17: #{fcos_forward_onnx.1} parent=11 // pred_check
        %p165 = pneg %p79
      $region18: #{fcos_forward_onnx.1} parent=11 // pred_check_branch
        %167 = sbr.rel (%p165) target = $region20
      $region19: #{fcos_forward_onnx.1} parent=11 // pred_region
        _
      $region20: #{fcos_forward_onnx.1} parent=11 // pred_fallthru
        _
      // Predicated region
      $region21: #{fcos_forward_onnx.1} parent=11 // pred_check
        %p168 = pneg %p100
      $region22: #{fcos_forward_onnx.1} parent=11 // pred_check_branch
        %170 = sbr.rel (%p168) target = $region24
      $region23: #{fcos_forward_onnx.1} parent=11 // pred_region
        _
      $region24: #{fcos_forward_onnx.1} parent=11 // pred_fallthru
        _
      // Predicated region
      $region25: #{fcos_forward_onnx.1} parent=11 // pred_check
        %p171 = pneg %p121
      $region26: #{fcos_forward_onnx.1} parent=11 // pred_check_branch
        %173 = sbr.rel (%p171) target = $region28
      $region27: #{fcos_forward_onnx.1} parent=11 // pred_region
        _
      $region28: #{fcos_forward_onnx.1} parent=11 // pred_fallthru
        _
    $region12: #{fcos_forward_onnx.1} parent=5 // pred_fallthru
      _
    %p174 = scmp.lt.s32.totalorder %s11, 2
    // Predicated region
    $region29: #{fcos_forward_onnx.1} parent=5 // pred_check
      %p175 = pneg %p174
    $region30: #{fcos_forward_onnx.1} parent=5 // pred_check_branch
      %177 = sbr.rel (%p175) target = $region32
    $region31: #{fcos_forward_onnx.1} parent=5 // pred_region
      // Predicated region
      $region33: #{fcos_forward_onnx.1} parent=31 // pred_check
        %p178 = pneg %p31
      $region34: #{fcos_forward_onnx.1} parent=31 // pred_check_branch
        %180 = sbr.rel (%p178) target = $region36
      $region35: #{fcos_forward_onnx.1} parent=31 // pred_region
        %p181 = scmp.lt.s32.totalorder %s11, 1
        %s182 = scalar_select %p181, %s11, 1
        %s183 = smul.addr %s182, 54
        %s184 = smul.addr %s183, 4
        %s185 = scalar_lea.vmem %s0, %s184
      $region36: #{fcos_forward_onnx.1} parent=31 // pred_fallthru
        _
    $region32: #{fcos_forward_onnx.1} parent=5 // pred_fallthru
      _
    %p186 = scmp.le.s32.totalorder 1, %s11
    %p187 = scmp.lt.s32.totalorder %s11, 3
    %p188 = pnand %p186, %p187
    %p189 = pneg %p188
    // Predicated region
    $region37: #{fcos_forward_onnx.1} parent=5 // pred_check
      _
    $region38: #{fcos_forward_onnx.1} parent=5 // pred_check_branch
      %191 = sbr.rel (%p188) target = $region40
    $region39: #{fcos_forward_onnx.1} parent=5 // pred_region
      %s192 = ssub.s32 %s11, 1
      %p193 = scmp.lt.s32.totalorder %s16, 1
      %s194 = scalar_select %p193, %s16, 1
      %s195 = smul.addr %s194, 54
      %s196 = smul.addr %s195, 4
      %s197 = scalar_lea.vmem %s0, %s196
      %p198 = pneg %p37
      %p199 = pneg %p34
      %p200 = pneg %p58
      %p201 = pneg %p55
      %p202 = pneg %p79
      %p203 = pneg %p76
      %p204 = pneg %p100
      %p205 = pneg %p97
      %p206 = pneg %p121
      %p207 = pneg %p118
      %p208 = pneg %p147
      %p209 = pneg %p144
      %p210 = scmp.lt.s32.totalorder %s16, 1
      %s211 = scalar_select %p210, %s16, 1
      %s212 = smul.addr %s211, 32
      %s213 = smul.addr %s212, 8
      %s214 = scalar_lea.vmem %s5, %s213
      %p215 = scmp.lt.s32.totalorder %s16, 1
      %s216 = scalar_select %p215, %s16, 1
      %s217 = smul.addr %s216, 54
      %s218 = smul.addr %s217, 4
      %s219 = scalar_lea.vmem %s0, %s218
      %p220 = scmp.lt.s32.totalorder %s16, 1
      %s221 = scalar_select %p220, %s16, 1
      %s222 = smul.addr %s221, 32
      %s223 = smul.addr %s222, 8
      %s224 = scalar_lea.vmem %s5, %s223
      %v226 = vld [vmem:[%s219] sm:$0xf]
      %v227 = vld [vmem:[%s219 + $0x4] sm:$0xf]
      %v228 = vld [vmem:[%s219 + $0x8] sm:$0x1]
      %v229 = vld [vmem:[%s219 + $0xc] sm:$0xf]
      %v230 = vld [vmem:[%s219 + $0x10] sm:$0xf]
      %v231 = vld [vmem:[%s219 + $0x14] sm:$0x1]
      %v232 = vld [vmem:[%s219 + $0x18] sm:$0xf]
      %v233 = vld [vmem:[%s219 + $0x1c] sm:$0xf]
      %v234 = vld [vmem:[%s219 + $0x20] sm:$0x1]
      %v235 = vld [vmem:[%s219 + $0x24] sm:$0xf]
      %v236 = vld [vmem:[%s219 + $0x28] sm:$0xf]
      %v237 = vld [vmem:[%s219 + $0x2c] sm:$0x1]
      %v238 = vld [vmem:[%s219 + $0x30] sm:$0xf]
      %v239 = vld [vmem:[%s219 + $0x34] sm:$0xf]
      %v240 = vld [vmem:[%s219 + $0x38] sm:$0x1]
      %v241 = vld [vmem:[%s219 + $0x3c] sm:$0xf]
      %v242 = vld [vmem:[%s219 + $0x40] sm:$0xf]
      %v243 = vld [vmem:[%s219 + $0x44] sm:$0x1]
      %v244 = vld [vmem:[%s219 + $0x48] sm:$0xf]
      %v245 = vld [vmem:[%s219 + $0x4c] sm:$0xf]
      %v246 = vld [vmem:[%s219 + $0x50] sm:$0x1]
      %v247 = vld [vmem:[%s219 + $0x54] sm:$0xf]
      %v248 = vld [vmem:[%s219 + $0x58] sm:$0xf]
      %v249 = vld [vmem:[%s219 + $0x5c] sm:$0x1]
      %v250 = vld [vmem:[%s219 + $0x60] sm:$0xf]
      %v251 = vld [vmem:[%s219 + $0x64] sm:$0xf]
      %v252 = vld [vmem:[%s219 + $0x68] sm:$0x1]
      %v253 = vld [vmem:[%s219 + $0x6c] sm:$0xf]
      %v254 = vld [vmem:[%s219 + $0x70] sm:$0xf]
      %v255 = vld [vmem:[%s219 + $0x74] sm:$0x1]
      %v256 = vld [vmem:[%s219 + $0x78] sm:$0xf]
      %v257 = vld [vmem:[%s219 + $0x7c] sm:$0xf]
      %v258 = vld [vmem:[%s219 + $0x80] sm:$0x1]
      %v259 = vld [vmem:[%s219 + $0x84] sm:$0xf]
      %v260 = vld [vmem:[%s219 + $0x88] sm:$0xf]
      %v261 = vld [vmem:[%s219 + $0x8c] sm:$0x1]
      %v262 = vld [vmem:[%s219 + $0x90] sm:$0xf]
      %v263 = vld [vmem:[%s219 + $0x94] sm:$0xf]
      %v264 = vld [vmem:[%s219 + $0x98] sm:$0x1]
      %v265 = vld [vmem:[%s219 + $0x9c] sm:$0xf]
      %v266 = vld [vmem:[%s219 + $0xa0] sm:$0xf]
      %v267 = vld [vmem:[%s219 + $0xa4] sm:$0x1]
      %v268 = vld [vmem:[%s219 + $0xa8] sm:$0xf]
      %v269 = vld [vmem:[%s219 + $0xac] sm:$0xf]
      %v270 = vld [vmem:[%s219 + $0xb0] sm:$0x1]
      %v271 = vld [vmem:[%s219 + $0xb4] sm:$0xf]
      %v272 = vld [vmem:[%s219 + $0xb8] sm:$0xf]
      %v273 = vld [vmem:[%s219 + $0xbc] sm:$0x1]
      %v274 = vld [vmem:[%s219 + $0xc0] sm:$0xf]
      %v275 = vld [vmem:[%s219 + $0xc4] sm:$0xf]
      %v276 = vld [vmem:[%s219 + $0xc8] sm:$0x1]
      %v277 = vld [vmem:[%s219 + $0xcc] sm:$0xf]
      %v278 = vld [vmem:[%s219 + $0xd0] sm:$0xf]
      %v279 = vld [vmem:[%s219 + $0xd4] sm:$0x1]
      %v280 = vunpack.c.l.bf16 %v226
      %v281 = vunpack.c.l.bf16 %v227
      %v282 = vunpack.c.l.bf16 %v228
      %v283 = vunpack.c.l.bf16 %v229
      %v284 = vunpack.c.l.bf16 %v230
      %v285 = vunpack.c.l.bf16 %v231
      %v286 = vunpack.c.l.bf16 %v232
      %v287 = vunpack.c.l.bf16 %v233
      %v288 = vunpack.c.l.bf16 %v234
      %v289 = vunpack.c.l.bf16 %v235
      %v290 = vunpack.c.l.bf16 %v236
      %v291 = vunpack.c.l.bf16 %v237
      %v292 = vunpack.c.l.bf16 %v238
      %v293 = vunpack.c.l.bf16 %v239
      %v294 = vunpack.c.l.bf16 %v240
      %v295 = vunpack.c.l.bf16 %v241
      %v296 = vunpack.c.l.bf16 %v242
      %v297 = vunpack.c.l.bf16 %v243
      %v298 = vunpack.c.l.bf16 %v244
      %v299 = vunpack.c.l.bf16 %v245
      %v300 = vunpack.c.l.bf16 %v246
      %v301 = vunpack.c.l.bf16 %v247
      %v302 = vunpack.c.l.bf16 %v248
      %v303 = vunpack.c.l.bf16 %v249
      %v304 = vunpack.c.l.bf16 %v250
      %v305 = vunpack.c.l.bf16 %v251
      %v306 = vunpack.c.l.bf16 %v252
      %v307 = vunpack.c.l.bf16 %v253
      %v308 = vunpack.c.l.bf16 %v254
      %v309 = vunpack.c.l.bf16 %v255
      %v310 = vunpack.c.l.bf16 %v256
      %v311 = vunpack.c.l.bf16 %v257
      %v312 = vunpack.c.l.bf16 %v258
      %v313 = vunpack.c.l.bf16 %v259
      %v314 = vunpack.c.l.bf16 %v260
      %v315 = vunpack.c.l.bf16 %v261
      %v316 = vunpack.c.l.bf16 %v262
      %v317 = vunpack.c.l.bf16 %v263
      %v318 = vunpack.c.l.bf16 %v264
      %v319 = vunpack.c.l.bf16 %v265
      %v320 = vunpack.c.l.bf16 %v266
      %v321 = vunpack.c.l.bf16 %v267
      %v322 = vunpack.c.l.bf16 %v268
      %v323 = vunpack.c.l.bf16 %v269
      %v324 = vunpack.c.l.bf16 %v270
      %v325 = vunpack.c.l.bf16 %v271
      %v326 = vunpack.c.l.bf16 %v272
      %v327 = vunpack.c.l.bf16 %v273
      %v328 = vunpack.c.l.bf16 %v274
      %v329 = vunpack.c.l.bf16 %v275
      %v330 = vunpack.c.l.bf16 %v276
      %v331 = vunpack.c.l.bf16 %v277
      %v332 = vunpack.c.l.bf16 %v278
      %v333 = vunpack.c.l.bf16 %v279
      %v334 = vpack.c.bf16 %v281, %v280
      %v335 = vpack.c.bf16 %v284, %v283
      %v336 = vpack.c.bf16 %v287, %v286
      %v337 = vpack.c.bf16 %v290, %v289
      %v338 = vpack.c.bf16 %v293, %v292
      %v339 = vpack.c.bf16 %v296, %v295
      %v340 = vpack.c.bf16 %v299, %v298
      %v341 = vpack.c.bf16 %v302, %v301
      %v342 = vpack.c.bf16 %v305, %v304
      %v343 = vpack.c.bf16 %v308, %v307
      %v344 = vpack.c.bf16 %v311, %v310
      %v345 = vpack.c.bf16 %v314, %v313
      %v346 = vpack.c.bf16 %v317, %v316
      %v347 = vpack.c.bf16 %v320, %v319
      %v348 = vpack.c.bf16 %v323, %v322
      %v349 = vpack.c.bf16 %v326, %v325
      %v350 = vld [vmem:[%s1] sm:$0x3]
      %vm399 = vcmask 1046528
      %v400 = vrot.slane %v280, 1
      %v401 = vrot.slane %v281, 1
      %v402 = vsel %vm399, %v400, %v401
      %v403 = vrot.slane %v282, 1
      %v404 = vsel %vm399, %v401, %v403
      %v405 = vrot.slane %v283, 1
      %v406 = vrot.slane %v284, 1
      %v407 = vsel %vm399, %v405, %v406
      %v408 = vrot.slane %v285, 1
      %v409 = vsel %vm399, %v406, %v408
      %v410 = vrot.slane %v286, 1
      %v411 = vrot.slane %v287, 1
      %v412 = vsel %vm399, %v410, %v411
      %v413 = vrot.slane %v288, 1
      %v414 = vsel %vm399, %v411, %v413
      %v415 = vrot.slane %v289, 1
      %v416 = vrot.slane %v290, 1
      %v417 = vsel %vm399, %v415, %v416
      %v418 = vrot.slane %v291, 1
      %v419 = vsel %vm399, %v416, %v418
      %v420 = vrot.slane %v292, 1
      %v421 = vrot.slane %v293, 1
      %v422 = vsel %vm399, %v420, %v421
      %v423 = vrot.slane %v294, 1
      %v424 = vsel %vm399, %v421, %v423
      %v425 = vrot.slane %v295, 1
      %v426 = vrot.slane %v296, 1
      %v427 = vsel %vm399, %v425, %v426
      %v428 = vrot.slane %v297, 1
      %v429 = vsel %vm399, %v426, %v428
      %v430 = vrot.slane %v298, 1
      %v431 = vrot.slane %v299, 1
      %v432 = vsel %vm399, %v430, %v431
      %v433 = vrot.slane %v300, 1
      %v434 = vsel %vm399, %v431, %v433
      %v435 = vrot.slane %v301, 1
      %v436 = vrot.slane %v302, 1
      %v437 = vsel %vm399, %v435, %v436
      %v438 = vrot.slane %v303, 1
      %v439 = vsel %vm399, %v436, %v438
      %v440 = vrot.slane %v304, 1
      %v441 = vrot.slane %v305, 1
      %v442 = vsel %vm399, %v440, %v441
      %v443 = vrot.slane %v306, 1
      %v444 = vsel %vm399, %v441, %v443
      %v445 = vrot.slane %v307, 1
      %v446 = vrot.slane %v308, 1
      %v447 = vsel %vm399, %v445, %v446
      %v448 = vrot.slane %v309, 1
      %v449 = vsel %vm399, %v446, %v448
      %v450 = vrot.slane %v310, 1
      %v451 = vrot.slane %v311, 1
      %v452 = vsel %vm399, %v450, %v451
      %v453 = vrot.slane %v312, 1
      %v454 = vsel %vm399, %v451, %v453
      %v455 = vrot.slane %v313, 1
      %v456 = vrot.slane %v314, 1
      %v457 = vsel %vm399, %v455, %v456
      %v458 = vrot.slane %v315, 1
      %v459 = vsel %vm399, %v456, %v458
      %v460 = vrot.slane %v316, 1
      %v461 = vrot.slane %v317, 1
      %v462 = vsel %vm399, %v460, %v461
      %v463 = vrot.slane %v318, 1
      %v464 = vsel %vm399, %v461, %v463
      %v465 = vrot.slane %v319, 1
      %v466 = vrot.slane %v320, 1
      %v467 = vsel %vm399, %v465, %v466
      %v468 = vrot.slane %v321, 1
      %v469 = vsel %vm399, %v466, %v468
      %v470 = vrot.slane %v322, 1
      %v471 = vrot.slane %v323, 1
      %v472 = vsel %vm399, %v470, %v471
      %v473 = vrot.slane %v324, 1
      %v474 = vsel %vm399, %v471, %v473
      %v475 = vrot.slane %v325, 1
      %v476 = vrot.slane %v326, 1
      %v477 = vsel %vm399, %v475, %v476
      %v478 = vrot.slane %v327, 1
      %v479 = vsel %vm399, %v476, %v478
      %v512 = vpack.c.bf16 %v404, %v402
      %v513 = vpack.c.bf16 %v409, %v407
      %v514 = vpack.c.bf16 %v414, %v412
      %v515 = vpack.c.bf16 %v419, %v417
      %v516 = vpack.c.bf16 %v424, %v422
      %v517 = vpack.c.bf16 %v429, %v427
      %v518 = vpack.c.bf16 %v434, %v432
      %v519 = vpack.c.bf16 %v439, %v437
      %v520 = vpack.c.bf16 %v444, %v442
      %v521 = vpack.c.bf16 %v449, %v447
      %v522 = vpack.c.bf16 %v454, %v452
      %v523 = vpack.c.bf16 %v459, %v457
      %v524 = vpack.c.bf16 %v464, %v462
      %v525 = vpack.c.bf16 %v469, %v467
      %v526 = vpack.c.bf16 %v474, %v472
      %v527 = vpack.c.bf16 %v479, %v477
      %s528 = scalar_lea.vmem %s1, 2
      %v529 = vld [vmem:[%s528] sm:$0x3]
      %vm530 = vcmask 23552
      %v532 = vsel %vm530, %v512, 0
      %v535 = vsel %vm530, %v513, 0
      %v538 = vsel %vm530, %v514, 0
      %v541 = vsel %vm530, %v515, 0
      %v544 = vsel %vm530, %v516, 0
      %v547 = vsel %vm530, %v517, 0
      %v550 = vsel %vm530, %v518, 0
      %v553 = vsel %vm530, %v519, 0
      %v556 = vsel %vm530, %v520, 0
      %v559 = vsel %vm530, %v521, 0
      %v562 = vsel %vm530, %v522, 0
      %v565 = vsel %vm530, %v523, 0
      %v568 = vsel %vm530, %v524, 0
      %v571 = vsel %vm530, %v525, 0
      %v574 = vsel %vm530, %v526, 0
      %v577 = vsel %vm530, %v527, 0
      %vm579 = vcmask 1040384
      %vm580 = vcmask 1041408
      %v581 = vsel %vm579, 4294967295, 65535
      %v582 = vsel %vm580, %v581, 0
      %v584 = vand.u32 %v529, %v582
      %586 = vmatprep.subr.bf16.mxu0 0
      %587 = vmatpush1.bf16.msra.mxu0 %v584
      %588 = vmatprep.subr.bf16.mxu0 0
      %589 = vmatpush1.bf16.msra.mxu0 0
      %590 = vmatprep.subr.bf16.mxu0 0
      %591 = vmatpush1.bf16.msra.mxu0 0
      %592 = vmatprep.subr.bf16.mxu0 0
      %593 = vmatpush1.bf16.msra.mxu0 0
      %594 = vmatprep.subr.bf16.mxu0 0
      %595 = vmatpush1.bf16.msra.mxu0 0
      %596 = vmatprep.subr.bf16.mxu0 0
      %597 = vmatpush1.bf16.msra.mxu0 0
      %598 = vmatprep.subr.bf16.mxu0 0
      %599 = vmatpush1.bf16.msra.mxu0 0
      %600 = vmatprep.subr.bf16.mxu0 0
      %601 = vmatpush1.bf16.msra.mxu0 0
      %602 = vmatprep.subr.bf16.mxu0 0
      %603 = vmatpush1.bf16.msra.mxu0 0
      %604 = vmatprep.subr.bf16.mxu0 0
      %605 = vmatpush1.bf16.msra.mxu0 0
      %606 = vmatprep.subr.bf16.mxu0 0
      %607 = vmatpush1.bf16.msra.mxu0 0
      %608 = vmatprep.subr.bf16.mxu0 0
      %609 = vmatpush1.bf16.msra.mxu0 0
      %610 = vmatprep.subr.bf16.mxu0 0
      %611 = vmatpush1.bf16.msra.mxu0 0
      %612 = vmatprep.subr.bf16.mxu0 0
      %613 = vmatpush1.bf16.msra.mxu0 0
      %614 = vmatprep.subr.bf16.mxu0 0
      %615 = vmatpush1.bf16.msra.mxu0 0
      %616 = vmatprep.subr.bf16.mxu0 0
      %617 = vmatpush1.bf16.msra.mxu0 0
      %618 = vmatprep.mubr.bf16.mxu0 0
      %619 = vmatmul.mubr.bf16.gmra.mrb[0].mxu0 %v532
      %v620 = vpop.f32.mrb[0].mxu0
      %v621 = vadd.f32 0.0, %v620
      %v622 = vpop.f32.mrb[0].mxu0
      %v623 = vpop.f32.mrb[0].mxu0
      %v624 = vadd.f32 0.0, %v623
      %v625 = vpop.f32.mrb[0].mxu0
      %626 = vmatprep.mubr.bf16.mxu0 0
      %627 = vmatmul.mubr.bf16.gmra.mrb[0].mxu0 %v535
      %v628 = vpop.f32.mrb[0].mxu0
      %v629 = vadd.f32 0.0, %v628
      %v630 = vpop.f32.mrb[0].mxu0
      %v631 = vpop.f32.mrb[0].mxu0
      %v632 = vadd.f32 0.0, %v631
      %v633 = vpop.f32.mrb[0].mxu0
      %634 = vmatprep.mubr.bf16.mxu0 0
      %635 = vmatmul.mubr.bf16.gmra.mrb[0].mxu0 %v538
      %v636 = vpop.f32.mrb[0].mxu0
      %v637 = vadd.f32 0.0, %v636
      %v638 = vpop.f32.mrb[0].mxu0
      %v639 = vpop.f32.mrb[0].mxu0
      %v640 = vadd.f32 0.0, %v639
      %v641 = vpop.f32.mrb[0].mxu0
      %642 = vmatprep.mubr.bf16.mxu0 0
      %643 = vmatmul.mubr.bf16.gmra.mrb[0].mxu0 %v541
      %v644 = vpop.f32.mrb[0].mxu0
      %v645 = vadd.f32 0.0, %v644
      %v646 = vpop.f32.mrb[0].mxu0
      %v647 = vpop.f32.mrb[0].mxu0
      %v648 = vadd.f32 0.0, %v647
      %v649 = vpop.f32.mrb[0].mxu0
      %650 = vmatprep.mubr.bf16.mxu0 0
      %651 = vmatmul.mubr.bf16.gmra.mrb[0].mxu0 %v544
      %v652 = vpop.f32.mrb[0].mxu0
      %v653 = vadd.f32 0.0, %v652
      %v654 = vpop.f32.mrb[0].mxu0
      %v655 = vpop.f32.mrb[0].mxu0
      %v656 = vadd.f32 0.0, %v655
      %v657 = vpop.f32.mrb[0].mxu0
      %658 = vmatprep.mubr.bf16.mxu0 0
      %659 = vmatmul.mubr.bf16.gmra.mrb[0].mxu0 %v547
      %v660 = vpop.f32.mrb[0].mxu0
      %v661 = vadd.f32 0.0, %v660
      %v662 = vpop.f32.mrb[0].mxu0
      %v663 = vpop.f32.mrb[0].mxu0
      %v664 = vadd.f32 0.0, %v663
      %v665 = vpop.f32.mrb[0].mxu0
      %666 = vmatprep.mubr.bf16.mxu0 0
      %667 = vmatmul.mubr.bf16.gmra.mrb[0].mxu0 %v550
      %v668 = vpop.f32.mrb[0].mxu0
      %v669 = vadd.f32 0.0, %v668
      %v670 = vpop.f32.mrb[0].mxu0
      %v671 = vpop.f32.mrb[0].mxu0
      %v672 = vadd.f32 0.0, %v671
      %v673 = vpop.f32.mrb[0].mxu0
      %674 = vmatprep.mubr.bf16.mxu0 0
      %675 = vmatmul.mubr.bf16.gmra.mrb[0].mxu0 %v553
      %v676 = vpop.f32.mrb[0].mxu0
      %v677 = vadd.f32 0.0, %v676
      %v678 = vpop.f32.mrb[0].mxu0
      %v679 = vpop.f32.mrb[0].mxu0
      %v680 = vadd.f32 0.0, %v679
      %v681 = vpop.f32.mrb[0].mxu0
      %682 = vmatprep.mubr.bf16.mxu0 0
      %683 = vmatmul.mubr.bf16.gmra.mrb[0].mxu0 %v556
      %v684 = vpop.f32.mrb[0].mxu0
      %v685 = vadd.f32 0.0, %v684
      %v686 = vpop.f32.mrb[0].mxu0
      %v687 = vpop.f32.mrb[0].mxu0
      %v688 = vadd.f32 0.0, %v687
      %v689 = vpop.f32.mrb[0].mxu0
      %690 = vmatprep.mubr.bf16.mxu0 0
      %691 = vmatmul.mubr.bf16.gmra.mrb[0].mxu0 %v559
      %v692 = vpop.f32.mrb[0].mxu0
      %v693 = vadd.f32 0.0, %v692
      %v694 = vpop.f32.mrb[0].mxu0
      %v695 = vpop.f32.mrb[0].mxu0
      %v696 = vadd.f32 0.0, %v695
      %v697 = vpop.f32.mrb[0].mxu0
      %698 = vmatprep.mubr.bf16.mxu0 0
      %699 = vmatmul.mubr.bf16.gmra.mrb[0].mxu0 %v562
      %v700 = vpop.f32.mrb[0].mxu0
      %v701 = vadd.f32 0.0, %v700
      %v702 = vpop.f32.mrb[0].mxu0
      %v703 = vpop.f32.mrb[0].mxu0
      %v704 = vadd.f32 0.0, %v703
      %v705 = vpop.f32.mrb[0].mxu0
      %706 = vmatprep.mubr.bf16.mxu0 0
      %707 = vmatmul.mubr.bf16.gmra.mrb[0].mxu0 %v565
      %v708 = vpop.f32.mrb[0].mxu0
      %v709 = vadd.f32 0.0, %v708
      %v710 = vpop.f32.mrb[0].mxu0
      %v711 = vpop.f32.mrb[0].mxu0
      %v712 = vadd.f32 0.0, %v711
      %v713 = vpop.f32.mrb[0].mxu0
      %714 = vmatprep.mubr.bf16.mxu0 0
      %715 = vmatmul.mubr.bf16.gmra.mrb[0].mxu0 %v568
      %v716 = vpop.f32.mrb[0].mxu0
      %v717 = vadd.f32 0.0, %v716
      %v718 = vpop.f32.mrb[0].mxu0
      %v719 = vpop.f32.mrb[0].mxu0
      %v720 = vadd.f32 0.0, %v719
      %v721 = vpop.f32.mrb[0].mxu0
      %722 = vmatprep.mubr.bf16.mxu0 0
      %723 = vmatmul.mubr.bf16.gmra.mrb[0].mxu0 %v571
      %v724 = vpop.f32.mrb[0].mxu0
      %v725 = vadd.f32 0.0, %v724
      %v726 = vpop.f32.mrb[0].mxu0
      %v727 = vpop.f32.mrb[0].mxu0
      %v728 = vadd.f32 0.0, %v727
      %v729 = vpop.f32.mrb[0].mxu0
      %730 = vmatprep.mubr.bf16.mxu0 0
      %731 = vmatmul.mubr.bf16.gmra.mrb[0].mxu0 %v574
      %v732 = vpop.f32.mrb[0].mxu0
      %v733 = vadd.f32 0.0, %v732
      %v734 = vpop.f32.mrb[0].mxu0
      %v735 = vpop.f32.mrb[0].mxu0
      %v736 = vadd.f32 0.0, %v735
      %v737 = vpop.f32.mrb[0].mxu0
      %738 = vmatprep.mubr.bf16.mxu0 0
      %739 = vmatmul.mubr.bf16.gmra.mrb[0].mxu0 %v577
      %v740 = vpop.f32.mrb[0].mxu0
      %v741 = vadd.f32 0.0, %v740
      %v742 = vpop.f32.mrb[0].mxu0
      %v743 = vpop.f32.mrb[0].mxu0
      %v744 = vadd.f32 0.0, %v743
      %v745 = vpop.f32.mrb[0].mxu0
      %746 = vdwg.mxu0
      %v748 = vsel %vm530, %v334, 0
      %v751 = vsel %vm530, %v335, 0
      %v754 = vsel %vm530, %v336, 0
      %v757 = vsel %vm530, %v337, 0
      %v760 = vsel %vm530, %v338, 0
      %v763 = vsel %vm530, %v339, 0
      %v766 = vsel %vm530, %v340, 0
      %v769 = vsel %vm530, %v341, 0
      %v772 = vsel %vm530, %v342, 0
      %v775 = vsel %vm530, %v343, 0
      %v778 = vsel %vm530, %v344, 0
      %v781 = vsel %vm530, %v345, 0
      %v784 = vsel %vm530, %v346, 0
      %v787 = vsel %vm530, %v347, 0
      %v790 = vsel %vm530, %v348, 0
      %v793 = vsel %vm530, %v349, 0
      %v796 = vand.u32 %v350, %v582
      %798 = vmatprep.subr.bf16.mxu0 0
      %799 = vmatpush1.bf16.msra.mxu0 %v796
      %800 = vmatprep.subr.bf16.mxu0 0
      %801 = vmatpush1.bf16.msra.mxu0 0
      %802 = vmatprep.subr.bf16.mxu0 0
      %803 = vmatpush1.bf16.msra.mxu0 0
      %804 = vmatprep.subr.bf16.mxu0 0
      %805 = vmatpush1.bf16.msra.mxu0 0
      %806 = vmatprep.subr.bf16.mxu0 0
      %807 = vmatpush1.bf16.msra.mxu0 0
      %808 = vmatprep.subr.bf16.mxu0 0
      %809 = vmatpush1.bf16.msra.mxu0 0
      %810 = vmatprep.subr.bf16.mxu0 0
      %811 = vmatpush1.bf16.msra.mxu0 0
      %812 = vmatprep.subr.bf16.mxu0 0
      %813 = vmatpush1.bf16.msra.mxu0 0
      %814 = vmatprep.subr.bf16.mxu0 0
      %815 = vmatpush1.bf16.msra.mxu0 0
      %816 = vmatprep.subr.bf16.mxu0 0
      %817 = vmatpush1.bf16.msra.mxu0 0
      %818 = vmatprep.subr.bf16.mxu0 0
      %819 = vmatpush1.bf16.msra.mxu0 0
      %820 = vmatprep.subr.bf16.mxu0 0
      %821 = vmatpush1.bf16.msra.mxu0 0
      %822 = vmatprep.subr.bf16.mxu0 0
      %823 = vmatpush1.bf16.msra.mxu0 0
      %824 = vmatprep.subr.bf16.mxu0 0
      %825 = vmatpush1.bf16.msra.mxu0 0
      %826 = vmatprep.subr.bf16.mxu0 0
      %827 = vmatpush1.bf16.msra.mxu0 0
      %828 = vmatprep.subr.bf16.mxu0 0
      %829 = vmatpush1.bf16.msra.mxu0 0
      %830 = vmatprep.mubr.bf16.mxu0 0
      %831 = vmatmul.mubr.bf16.gmra.mrb[0].mxu0 %v748
      %v832 = vpop.f32.mrb[0].mxu0
      %v833 = vadd.f32 %v621, %v832
      %v834 = vpop.f32.mrb[0].mxu0
      %v835 = vpop.f32.mrb[0].mxu0
      %v836 = vadd.f32 %v624, %v835
      %v837 = vpop.f32.mrb[0].mxu0
      %838 = vmatprep.mubr.bf16.mxu0 0
      %839 = vmatmul.mubr.bf16.gmra.mrb[0].mxu0 %v751
      %v840 = vpop.f32.mrb[0].mxu0
      %v841 = vadd.f32 %v629, %v840
      %v842 = vpop.f32.mrb[0].mxu0
      %v843 = vpop.f32.mrb[0].mxu0
      %v844 = vadd.f32 %v632, %v843
      %v845 = vpop.f32.mrb[0].mxu0
      %846 = vmatprep.mubr.bf16.mxu0 0
      %847 = vmatmul.mubr.bf16.gmra.mrb[0].mxu0 %v754
      %v848 = vpop.f32.mrb[0].mxu0
      %v849 = vadd.f32 %v637, %v848
      %v850 = vpop.f32.mrb[0].mxu0
      %v851 = vpop.f32.mrb[0].mxu0
      %v852 = vadd.f32 %v640, %v851
      %v853 = vpop.f32.mrb[0].mxu0
      %854 = vmatprep.mubr.bf16.mxu0 0
      %855 = vmatmul.mubr.bf16.gmra.mrb[0].mxu0 %v757
      %v856 = vpop.f32.mrb[0].mxu0
      %v857 = vadd.f32 %v645, %v856
      %v858 = vpop.f32.mrb[0].mxu0
      %v859 = vpop.f32.mrb[0].mxu0
      %v860 = vadd.f32 %v648, %v859
      %v861 = vpop.f32.mrb[0].mxu0
      %862 = vmatprep.mubr.bf16.mxu0 0
      %863 = vmatmul.mubr.bf16.gmra.mrb[0].mxu0 %v760
      %v864 = vpop.f32.mrb[0].mxu0
      %v865 = vadd.f32 %v653, %v864
      %v866 = vpop.f32.mrb[0].mxu0
      %v867 = vpop.f32.mrb[0].mxu0
      %v868 = vadd.f32 %v656, %v867
      %v869 = vpop.f32.mrb[0].mxu0
      %870 = vmatprep.mubr.bf16.mxu0 0
      %871 = vmatmul.mubr.bf16.gmra.mrb[0].mxu0 %v763
      %v872 = vpop.f32.mrb[0].mxu0
      %v873 = vadd.f32 %v661, %v872
      %v874 = vpop.f32.mrb[0].mxu0
      %v875 = vpop.f32.mrb[0].mxu0
      %v876 = vadd.f32 %v664, %v875
      %v877 = vpop.f32.mrb[0].mxu0
      %878 = vmatprep.mubr.bf16.mxu0 0
      %879 = vmatmul.mubr.bf16.gmra.mrb[0].mxu0 %v766
      %v880 = vpop.f32.mrb[0].mxu0
      %v881 = vadd.f32 %v669, %v880
      %v882 = vpop.f32.mrb[0].mxu0
      %v883 = vpop.f32.mrb[0].mxu0
      %v884 = vadd.f32 %v672, %v883
      %v885 = vpop.f32.mrb[0].mxu0
      %886 = vmatprep.mubr.bf16.mxu0 0
      %887 = vmatmul.mubr.bf16.gmra.mrb[0].mxu0 %v769
      %v888 = vpop.f32.mrb[0].mxu0
      %v889 = vadd.f32 %v677, %v888
      %v890 = vpop.f32.mrb[0].mxu0
      %v891 = vpop.f32.mrb[0].mxu0
      %v892 = vadd.f32 %v680, %v891
      %v893 = vpop.f32.mrb[0].mxu0
      %894 = vmatprep.mubr.bf16.mxu0 0
      %895 = vmatmul.mubr.bf16.gmra.mrb[0].mxu0 %v772
      %v896 = vpop.f32.mrb[0].mxu0
      %v897 = vadd.f32 %v685, %v896
      %v898 = vpop.f32.mrb[0].mxu0
      %v899 = vpop.f32.mrb[0].mxu0
      %v900 = vadd.f32 %v688, %v899
      %v901 = vpop.f32.mrb[0].mxu0
      %902 = vmatprep.mubr.bf16.mxu0 0
      %903 = vmatmul.mubr.bf16.gmra.mrb[0].mxu0 %v775
      %v904 = vpop.f32.mrb[0].mxu0
      %v905 = vadd.f32 %v693, %v904
      %v906 = vpop.f32.mrb[0].mxu0
      %v907 = vpop.f32.mrb[0].mxu0
      %v908 = vadd.f32 %v696, %v907
      %v909 = vpop.f32.mrb[0].mxu0
      %910 = vmatprep.mubr.bf16.mxu0 0
      %911 = vmatmul.mubr.bf16.gmra.mrb[0].mxu0 %v778
      %v912 = vpop.f32.mrb[0].mxu0
      %v913 = vadd.f32 %v701, %v912
      %v914 = vpop.f32.mrb[0].mxu0
      %v915 = vpop.f32.mrb[0].mxu0
      %v916 = vadd.f32 %v704, %v915
      %v917 = vpop.f32.mrb[0].mxu0
      %918 = vmatprep.mubr.bf16.mxu0 0
      %919 = vmatmul.mubr.bf16.gmra.mrb[0].mxu0 %v781
      %v920 = vpop.f32.mrb[0].mxu0
      %v921 = vadd.f32 %v709, %v920
      %v922 = vpop.f32.mrb[0].mxu0
      %v923 = vpop.f32.mrb[0].mxu0
      %v924 = vadd.f32 %v712, %v923
      %v925 = vpop.f32.mrb[0].mxu0
      %926 = vmatprep.mubr.bf16.mxu0 0
      %927 = vmatmul.mubr.bf16.gmra.mrb[0].mxu0 %v784
      %v928 = vpop.f32.mrb[0].mxu0
      %v929 = vadd.f32 %v717, %v928
      %v930 = vpop.f32.mrb[0].mxu0
      %v931 = vpop.f32.mrb[0].mxu0
      %v932 = vadd.f32 %v720, %v931
      %v933 = vpop.f32.mrb[0].mxu0
      %934 = vmatprep.mubr.bf16.mxu0 0
      %935 = vmatmul.mubr.bf16.gmra.mrb[0].mxu0 %v787
      %v936 = vpop.f32.mrb[0].mxu0
      %v937 = vadd.f32 %v725, %v936
      %v938 = vpop.f32.mrb[0].mxu0
      %v939 = vpop.f32.mrb[0].mxu0
      %v940 = vadd.f32 %v728, %v939
      %v941 = vpop.f32.mrb[0].mxu0
      %942 = vmatprep.mubr.bf16.mxu0 0
      %943 = vmatmul.mubr.bf16.gmra.mrb[0].mxu0 %v790
      %v944 = vpop.f32.mrb[0].mxu0
      %v945 = vadd.f32 %v733, %v944
      %v946 = vpop.f32.mrb[0].mxu0
      %v947 = vpop.f32.mrb[0].mxu0
      %v948 = vadd.f32 %v736, %v947
      %v949 = vpop.f32.mrb[0].mxu0
      %950 = vmatprep.mubr.bf16.mxu0 0
      %951 = vmatmul.mubr.bf16.gmra.mrb[0].mxu0 %v793
      %v952 = vpop.f32.mrb[0].mxu0
      %v953 = vadd.f32 %v741, %v952
      %v954 = vpop.f32.mrb[0].mxu0
      %v955 = vpop.f32.mrb[0].mxu0
      %v956 = vadd.f32 %v744, %v955
      %v957 = vpop.f32.mrb[0].mxu0
      %958 = vdwg.mxu0
      %vm959 = vcmask 1045504
      %v960 = vrot.slane %v280, 2
      %v961 = vrot.slane %v281, 2
      %v962 = vsel %vm959, %v960, %v961
      %v963 = vrot.slane %v282, 2
      %v964 = vsel %vm959, %v961, %v963
      %v965 = vrot.slane %v283, 2
      %v966 = vrot.slane %v284, 2
      %v967 = vsel %vm959, %v965, %v966
      %v968 = vrot.slane %v285, 2
      %v969 = vsel %vm959, %v966, %v968
      %v970 = vrot.slane %v286, 2
      %v971 = vrot.slane %v287, 2
      %v972 = vsel %vm959, %v970, %v971
      %v973 = vrot.slane %v288, 2
      %v974 = vsel %vm959, %v971, %v973
      %v975 = vrot.slane %v289, 2
      %v976 = vrot.slane %v290, 2
      %v977 = vsel %vm959, %v975, %v976
      %v978 = vrot.slane %v291, 2
      %v979 = vsel %vm959, %v976, %v978
      %v980 = vrot.slane %v292, 2
      %v981 = vrot.slane %v293, 2
      %v982 = vsel %vm959, %v980, %v981
      %v983 = vrot.slane %v294, 2
      %v984 = vsel %vm959, %v981, %v983
      %v985 = vrot.slane %v295, 2
      %v986 = vrot.slane %v296, 2
      %v987 = vsel %vm959, %v985, %v986
      %v988 = vrot.slane %v297, 2
      %v989 = vsel %vm959, %v986, %v988
      %v990 = vrot.slane %v298, 2
      %v991 = vrot.slane %v299, 2
      %v992 = vsel %vm959, %v990, %v991
      %v993 = vrot.slane %v300, 2
      %v994 = vsel %vm959, %v991, %v993
      %v995 = vrot.slane %v301, 2
      %v996 = vrot.slane %v302, 2
      %v997 = vsel %vm959, %v995, %v996
      %v998 = vrot.slane %v303, 2
      %v999 = vsel %vm959, %v996, %v998
      %v1000 = vrot.slane %v304, 2
      %v1001 = vrot.slane %v305, 2
      %v1002 = vsel %vm959, %v1000, %v1001
      %v1003 = vrot.slane %v306, 2
      %v1004 = vsel %vm959, %v1001, %v1003
      %v1005 = vrot.slane %v307, 2
      %v1006 = vrot.slane %v308, 2
      %v1007 = vsel %vm959, %v1005, %v1006
      %v1008 = vrot.slane %v309, 2
      %v1009 = vsel %vm959, %v1006, %v1008
      %v1010 = vrot.slane %v310, 2
      %v1011 = vrot.slane %v311, 2
      %v1012 = vsel %vm959, %v1010, %v1011
      %v1013 = vrot.slane %v312, 2
      %v1014 = vsel %vm959, %v1011, %v1013
      %v1015 = vrot.slane %v313, 2
      %v1016 = vrot.slane %v314, 2
      %v1017 = vsel %vm959, %v1015, %v1016
      %v1018 = vrot.slane %v315, 2
      %v1019 = vsel %vm959, %v1016, %v1018
      %v1020 = vrot.slane %v316, 2
      %v1021 = vrot.slane %v317, 2
      %v1022 = vsel %vm959, %v1020, %v1021
      %v1023 = vrot.slane %v318, 2
      %v1024 = vsel %vm959, %v1021, %v1023
      %v1025 = vrot.slane %v319, 2
      %v1026 = vrot.slane %v320, 2
      %v1027 = vsel %vm959, %v1025, %v1026
      %v1028 = vrot.slane %v321, 2
      %v1029 = vsel %vm959, %v1026, %v1028
      %v1030 = vrot.slane %v322, 2
      %v1031 = vrot.slane %v323, 2
      %v1032 = vsel %vm959, %v1030, %v1031
      %v1033 = vrot.slane %v324, 2
      %v1034 = vsel %vm959, %v1031, %v1033
      %v1035 = vrot.slane %v325, 2
      %v1036 = vrot.slane %v326, 2
      %v1037 = vsel %vm959, %v1035, %v1036
      %v1038 = vrot.slane %v327, 2
      %v1039 = vsel %vm959, %v1036, %v1038
      %v1072 = vpack.c.bf16 %v964, %v962
      %v1073 = vpack.c.bf16 %v969, %v967
      %v1074 = vpack.c.bf16 %v974, %v972
      %v1075 = vpack.c.bf16 %v979, %v977
      %v1076 = vpack.c.bf16 %v984, %v982
      %v1077 = vpack.c.bf16 %v989, %v987
      %v1078 = vpack.c.bf16 %v994, %v992
      %v1079 = vpack.c.bf16 %v999, %v997
      %v1080 = vpack.c.bf16 %v1004, %v1002
      %v1081 = vpack.c.bf16 %v1009, %v1007
      %v1082 = vpack.c.bf16 %v1014, %v1012
      %v1083 = vpack.c.bf16 %v1019, %v1017
      %v1084 = vpack.c.bf16 %v1024, %v1022
      %v1085 = vpack.c.bf16 %v1029, %v1027
      %v1086 = vpack.c.bf16 %v1034, %v1032
      %v1087 = vpack.c.bf16 %v1039, %v1037
      %s1088 = scalar_lea.vmem %s1, 4
      %v1089 = vld [vmem:[%s1088] sm:$0x3]
      %v1091 = vsel %vm530, %v1072, 0
      %v1094 = vsel %vm530, %v1073, 0
      %v1097 = vsel %vm530, %v1074, 0
      %v1100 = vsel %vm530, %v1075, 0
      %v1103 = vsel %vm530, %v1076, 0
      %v1106 = vsel %vm530, %v1077, 0
      %v1109 = vsel %vm530, %v1078, 0
      %v1112 = vsel %vm530, %v1079, 0
      %v1115 = vsel %vm530, %v1080, 0
      %v1118 = vsel %vm530, %v1081, 0
      %v1121 = vsel %vm530, %v1082, 0
      %v1124 = vsel %vm530, %v1083, 0
      %v1127 = vsel %vm530, %v1084, 0
      %v1130 = vsel %vm530, %v1085, 0
      %v1133 = vsel %vm530, %v1086, 0
      %v1136 = vsel %vm530, %v1087, 0
      %v1139 = vand.u32 %v1089, %v582
      %1141 = vmatprep.subr.bf16.mxu0 0
      %1142 = vmatpush1.bf16.msra.mxu0 %v1139
      %1143 = vmatprep.subr.bf16.mxu0 0
      %1144 = vmatpush1.bf16.msra.mxu0 0
      %1145 = vmatprep.subr.bf16.mxu0 0
      %1146 = vmatpush1.bf16.msra.mxu0 0
      %1147 = vmatprep.subr.bf16.mxu0 0
      %1148 = vmatpush1.bf16.msra.mxu0 0
      %1149 = vmatprep.subr.bf16.mxu0 0
      %1150 = vmatpush1.bf16.msra.mxu0 0
      %1151 = vmatprep.subr.bf16.mxu0 0
      %1152 = vmatpush1.bf16.msra.mxu0 0
      %1153 = vmatprep.subr.bf16.mxu0 0
      %1154 = vmatpush1.bf16.msra.mxu0 0
      %1155 = vmatprep.subr.bf16.mxu0 0
      %1156 = vmatpush1.bf16.msra.mxu0 0
      %1157 = vmatprep.subr.bf16.mxu0 0
      %1158 = vmatpush1.bf16.msra.mxu0 0
      %1159 = vmatprep.subr.bf16.mxu0 0
      %1160 = vmatpush1.bf16.msra.mxu0 0
      %1161 = vmatprep.subr.bf16.mxu0 0
      %1162 = vmatpush1.bf16.msra.mxu0 0
      %1163 = vmatprep.subr.bf16.mxu0 0
      %1164 = vmatpush1.bf16.msra.mxu0 0
      %1165 = vmatprep.subr.bf16.mxu0 0
      %1166 = vmatpush1.bf16.msra.mxu0 0
      %1167 = vmatprep.subr.bf16.mxu0 0
      %1168 = vmatpush1.bf16.msra.mxu0 0
      %1169 = vmatprep.subr.bf16.mxu0 0
      %1170 = vmatpush1.bf16.msra.mxu0 0
      %1171 = vmatprep.subr.bf16.mxu0 0
      %1172 = vmatpush1.bf16.msra.mxu0 0
      %1173 = vmatprep.mubr.bf16.mxu0 0
      %1174 = vmatmul.mubr.bf16.gmra.mrb[0].mxu0 %v1091
      %v1175 = vpop.f32.mrb[0].mxu0
      %v1176 = vadd.f32 0.0, %v1175
      %v1177 = vpop.f32.mrb[0].mxu0
      %v1178 = vpop.f32.mrb[0].mxu0
      %v1179 = vadd.f32 0.0, %v1178
      %v1180 = vpop.f32.mrb[0].mxu0
      %1181 = vmatprep.mubr.bf16.mxu0 0
      %1182 = vmatmul.mubr.bf16.gmra.mrb[0].mxu0 %v1094
      %v1183 = vpop.f32.mrb[0].mxu0
      %v1184 = vadd.f32 0.0, %v1183
      %v1185 = vpop.f32.mrb[0].mxu0
      %v1186 = vpop.f32.mrb[0].mxu0
      %v1187 = vadd.f32 0.0, %v1186
      %v1188 = vpop.f32.mrb[0].mxu0
      %1189 = vmatprep.mubr.bf16.mxu0 0
      %1190 = vmatmul.mubr.bf16.gmra.mrb[0].mxu0 %v1097
      %v1191 = vpop.f32.mrb[0].mxu0
      %v1192 = vadd.f32 0.0, %v1191
      %v1193 = vpop.f32.mrb[0].mxu0
      %v1194 = vpop.f32.mrb[0].mxu0
      %v1195 = vadd.f32 0.0, %v1194
      %v1196 = vpop.f32.mrb[0].mxu0
      %1197 = vmatprep.mubr.bf16.mxu0 0
      %1198 = vmatmul.mubr.bf16.gmra.mrb[0].mxu0 %v1100
      %v1199 = vpop.f32.mrb[0].mxu0
      %v1200 = vadd.f32 0.0, %v1199
      %v1201 = vpop.f32.mrb[0].mxu0
      %v1202 = vpop.f32.mrb[0].mxu0
      %v1203 = vadd.f32 0.0, %v1202
      %v1204 = vpop.f32.mrb[0].mxu0
      %1205 = vmatprep.mubr.bf16.mxu0 0
      %1206 = vmatmul.mubr.bf16.gmra.mrb[0].mxu0 %v1103
      %v1207 = vpop.f32.mrb[0].mxu0
      %v1208 = vadd.f32 0.0, %v1207
      %v1209 = vpop.f32.mrb[0].mxu0
      %v1210 = vpop.f32.mrb[0].mxu0
      %v1211 = vadd.f32 0.0, %v1210
      %v1212 = vpop.f32.mrb[0].mxu0
      %1213 = vmatprep.mubr.bf16.mxu0 0
      %1214 = vmatmul.mubr.bf16.gmra.mrb[0].mxu0 %v1106
      %v1215 = vpop.f32.mrb[0].mxu0
      %v1216 = vadd.f32 0.0, %v1215
      %v1217 = vpop.f32.mrb[0].mxu0
      %v1218 = vpop.f32.mrb[0].mxu0
      %v1219 = vadd.f32 0.0, %v1218
      %v1220 = vpop.f32.mrb[0].mxu0
      %1221 = vmatprep.mubr.bf16.mxu0 0
      %1222 = vmatmul.mubr.bf16.gmra.mrb[0].mxu0 %v1109
      %v1223 = vpop.f32.mrb[0].mxu0
      %v1224 = vadd.f32 0.0, %v1223
      %v1225 = vpop.f32.mrb[0].mxu0
      %v1226 = vpop.f32.mrb[0].mxu0
      %v1227 = vadd.f32 0.0, %v1226
      %v1228 = vpop.f32.mrb[0].mxu0
      %1229 = vmatprep.mubr.bf16.mxu0 0
      %1230 = vmatmul.mubr.bf16.gmra.mrb[0].mxu0 %v1112
      %v1231 = vpop.f32.mrb[0].mxu0
      %v1232 = vadd.f32 0.0, %v1231
      %v1233 = vpop.f32.mrb[0].mxu0
      %v1234 = vpop.f32.mrb[0].mxu0
      %v1235 = vadd.f32 0.0, %v1234
      %v1236 = vpop.f32.mrb[0].mxu0
      %1237 = vmatprep.mubr.bf16.mxu0 0
      %1238 = vmatmul.mubr.bf16.gmra.mrb[0].mxu0 %v1115
      %v1239 = vpop.f32.mrb[0].mxu0
      %v1240 = vadd.f32 0.0, %v1239
      %v1241 = vpop.f32.mrb[0].mxu0
      %v1242 = vpop.f32.mrb[0].mxu0
      %v1243 = vadd.f32 0.0, %v1242
      %v1244 = vpop.f32.mrb[0].mxu0
      %1245 = vmatprep.mubr.bf16.mxu0 0
      %1246 = vmatmul.mubr.bf16.gmra.mrb[0].mxu0 %v1118
      %v1247 = vpop.f32.mrb[0].mxu0
      %v1248 = vadd.f32 0.0, %v1247
      %v1249 = vpop.f32.mrb[0].mxu0
      %v1250 = vpop.f32.mrb[0].mxu0
      %v1251 = vadd.f32 0.0, %v1250
      %v1252 = vpop.f32.mrb[0].mxu0
      %1253 = vmatprep.mubr.bf16.mxu0 0
      %1254 = vmatmul.mubr.bf16.gmra.mrb[0].mxu0 %v1121
      %v1255 = vpop.f32.mrb[0].mxu0
      %v1256 = vadd.f32 0.0, %v1255
      %v1257 = vpop.f32.mrb[0].mxu0
      %v1258 = vpop.f32.mrb[0].mxu0
      %v1259 = vadd.f32 0.0, %v1258
      %v1260 = vpop.f32.mrb[0].mxu0
      %1261 = vmatprep.mubr.bf16.mxu0 0
      %1262 = vmatmul.mubr.bf16.gmra.mrb[0].mxu0 %v1124
      %v1263 = vpop.f32.mrb[0].mxu0
      %v1264 = vadd.f32 0.0, %v1263
      %v1265 = vpop.f32.mrb[0].mxu0
      %v1266 = vpop.f32.mrb[0].mxu0
      %v1267 = vadd.f32 0.0, %v1266
      %v1268 = vpop.f32.mrb[0].mxu0
      %1269 = vmatprep.mubr.bf16.mxu0 0
      %1270 = vmatmul.mubr.bf16.gmra.mrb[0].mxu0 %v1127
      %v1271 = vpop.f32.mrb[0].mxu0
      %v1272 = vadd.f32 0.0, %v1271
      %v1273 = vpop.f32.mrb[0].mxu0
      %v1274 = vpop.f32.mrb[0].mxu0
      %v1275 = vadd.f32 0.0, %v1274
      %v1276 = vpop.f32.mrb[0].mxu0
      %1277 = vmatprep.mubr.bf16.mxu0 0
      %1278 = vmatmul.mubr.bf16.gmra.mrb[0].mxu0 %v1130
      %v1279 = vpop.f32.mrb[0].mxu0
      %v1280 = vadd.f32 0.0, %v1279
      %v1281 = vpop.f32.mrb[0].mxu0
      %v1282 = vpop.f32.mrb[0].mxu0
      %v1283 = vadd.f32 0.0, %v1282
      %v1284 = vpop.f32.mrb[0].mxu0
      %1285 = vmatprep.mubr.bf16.mxu0 0
      %1286 = vmatmul.mubr.bf16.gmra.mrb[0].mxu0 %v1133
      %v1287 = vpop.f32.mrb[0].mxu0
      %v1288 = vadd.f32 0.0, %v1287
      %v1289 = vpop.f32.mrb[0].mxu0
      %v1290 = vpop.f32.mrb[0].mxu0
      %v1291 = vadd.f32 0.0, %v1290
      %v1292 = vpop.f32.mrb[0].mxu0
      %1293 = vmatprep.mubr.bf16.mxu0 0
      %1294 = vmatmul.mubr.bf16.gmra.mrb[0].mxu0 %v1136
      %v1295 = vpop.f32.mrb[0].mxu0
      %v1296 = vadd.f32 0.0, %v1295
      %v1297 = vpop.f32.mrb[0].mxu0
      %v1298 = vpop.f32.mrb[0].mxu0
      %v1299 = vadd.f32 0.0, %v1298
      %v1300 = vpop.f32.mrb[0].mxu0
      %1301 = vdwg.mxu0
      %v1302 = vadd.f32 %v833, %v1176
      %v1303 = vadd.f32 %v836, %v1179
      %v1304 = vadd.f32 %v841, %v1184
      %v1305 = vadd.f32 %v844, %v1187
      %v1306 = vadd.f32 %v849, %v1192
      %v1307 = vadd.f32 %v852, %v1195
      %v1308 = vadd.f32 %v857, %v1200
      %v1309 = vadd.f32 %v860, %v1203
      %v1310 = vadd.f32 %v865, %v1208
      %v1311 = vadd.f32 %v868, %v1211
      %v1312 = vadd.f32 %v873, %v1216
      %v1313 = vadd.f32 %v876, %v1219
      %v1314 = vadd.f32 %v881, %v1224
      %v1315 = vadd.f32 %v884, %v1227
      %v1316 = vadd.f32 %v889, %v1232
      %v1317 = vadd.f32 %v892, %v1235
      %v1318 = vadd.f32 %v897, %v1240
      %v1319 = vadd.f32 %v900, %v1243
      %v1320 = vadd.f32 %v905, %v1248
      %v1321 = vadd.f32 %v908, %v1251
      %v1322 = vadd.f32 %v913, %v1256
      %v1323 = vadd.f32 %v916, %v1259
      %v1324 = vadd.f32 %v921, %v1264
      %v1325 = vadd.f32 %v924, %v1267
      %v1326 = vadd.f32 %v929, %v1272
      %v1327 = vadd.f32 %v932, %v1275
      %v1328 = vadd.f32 %v937, %v1280
      %v1329 = vadd.f32 %v940, %v1283
      %v1330 = vadd.f32 %v945, %v1288
      %v1331 = vadd.f32 %v948, %v1291
      %v1332 = vadd.f32 %v953, %v1296
      %v1333 = vadd.f32 %v956, %v1299
      %v1334 = vpack.c.bf16 %v329, %v328
      %s1335 = scalar_lea.vmem %s1, 6
      %v1336 = vld [vmem:[%s1335] sm:$0x3]
      %v1338 = vsel %vm530, %v1334, 0
      %v1341 = vand.u32 %v1336, %v582
      %1343 = vmatprep.subr.bf16.mxu0 0
      %1344 = vmatpush1.bf16.msra.mxu0 %v1341
      %1345 = vmatprep.subr.bf16.mxu0 0
      %1346 = vmatpush1.bf16.msra.mxu0 0
      %1347 = vmatprep.subr.bf16.mxu0 0
      %1348 = vmatpush1.bf16.msra.mxu0 0
      %1349 = vmatprep.subr.bf16.mxu0 0
      %1350 = vmatpush1.bf16.msra.mxu0 0
      %1351 = vmatprep.subr.bf16.mxu0 0
      %1352 = vmatpush1.bf16.msra.mxu0 0
      %1353 = vmatprep.subr.bf16.mxu0 0
      %1354 = vmatpush1.bf16.msra.mxu0 0
      %1355 = vmatprep.subr.bf16.mxu0 0
      %1356 = vmatpush1.bf16.msra.mxu0 0
      %1357 = vmatprep.subr.bf16.mxu0 0
      %1358 = vmatpush1.bf16.msra.mxu0 0
      %1359 = vmatprep.subr.bf16.mxu0 0
      %1360 = vmatpush1.bf16.msra.mxu0 0
      %1361 = vmatprep.subr.bf16.mxu0 0
      %1362 = vmatpush1.bf16.msra.mxu0 0
      %1363 = vmatprep.subr.bf16.mxu0 0
      %1364 = vmatpush1.bf16.msra.mxu0 0
      %1365 = vmatprep.subr.bf16.mxu0 0
      %1366 = vmatpush1.bf16.msra.mxu0 0
      %1367 = vmatprep.subr.bf16.mxu0 0
      %1368 = vmatpush1.bf16.msra.mxu0 0
      %1369 = vmatprep.subr.bf16.mxu0 0
      %1370 = vmatpush1.bf16.msra.mxu0 0
      %1371 = vmatprep.subr.bf16.mxu0 0
      %1372 = vmatpush1.bf16.msra.mxu0 0
      %1373 = vmatprep.subr.bf16.mxu0 0
      %1374 = vmatpush1.bf16.msra.mxu0 0
      %1375 = vmatprep.mubr.bf16.mxu0 0
      %1376 = vmatmul.mubr.bf16.gmra.mrb[0].mxu0 %v751
      %v1377 = vpop.f32.mrb[0].mxu0
      %v1378 = vadd.f32 0.0, %v1377
      %v1379 = vpop.f32.mrb[0].mxu0
      %v1380 = vpop.f32.mrb[0].mxu0
      %v1381 = vadd.f32 0.0, %v1380
      %v1382 = vpop.f32.mrb[0].mxu0
      %1383 = vmatprep.mubr.bf16.mxu0 0
      %1384 = vmatmul.mubr.bf16.gmra.mrb[0].mxu0 %v754
      %v1385 = vpop.f32.mrb[0].mxu0
      %v1386 = vadd.f32 0.0, %v1385
      %v1387 = vpop.f32.mrb[0].mxu0
      %v1388 = vpop.f32.mrb[0].mxu0
      %v1389 = vadd.f32 0.0, %v1388
      %v1390 = vpop.f32.mrb[0].mxu0
      %1391 = vmatprep.mubr.bf16.mxu0 0
      %1392 = vmatmul.mubr.bf16.gmra.mrb[0].mxu0 %v757
      %v1393 = vpop.f32.mrb[0].mxu0
      %v1394 = vadd.f32 0.0, %v1393
      %v1395 = vpop.f32.mrb[0].mxu0
      %v1396 = vpop.f32.mrb[0].mxu0
      %v1397 = vadd.f32 0.0, %v1396
      %v1398 = vpop.f32.mrb[0].mxu0
      %1399 = vmatprep.mubr.bf16.mxu0 0
      %1400 = vmatmul.mubr.bf16.gmra.mrb[0].mxu0 %v760
      %v1401 = vpop.f32.mrb[0].mxu0
      %v1402 = vadd.f32 0.0, %v1401
      %v1403 = vpop.f32.mrb[0].mxu0
      %v1404 = vpop.f32.mrb[0].mxu0
      %v1405 = vadd.f32 0.0, %v1404
      %v1406 = vpop.f32.mrb[0].mxu0
      %1407 = vmatprep.mubr.bf16.mxu0 0
      %1408 = vmatmul.mubr.bf16.gmra.mrb[0].mxu0 %v763
      %v1409 = vpop.f32.mrb[0].mxu0
      %v1410 = vadd.f32 0.0, %v1409
      %v1411 = vpop.f32.mrb[0].mxu0
      %v1412 = vpop.f32.mrb[0].mxu0
      %v1413 = vadd.f32 0.0, %v1412
      %v1414 = vpop.f32.mrb[0].mxu0
      %1415 = vmatprep.mubr.bf16.mxu0 0
      %1416 = vmatmul.mubr.bf16.gmra.mrb[0].mxu0 %v766
      %v1417 = vpop.f32.mrb[0].mxu0
      %v1418 = vadd.f32 0.0, %v1417
      %v1419 = vpop.f32.mrb[0].mxu0
      %v1420 = vpop.f32.mrb[0].mxu0
      %v1421 = vadd.f32 0.0, %v1420
      %v1422 = vpop.f32.mrb[0].mxu0
      %1423 = vmatprep.mubr.bf16.mxu0 0
      %1424 = vmatmul.mubr.bf16.gmra.mrb[0].mxu0 %v769
      %v1425 = vpop.f32.mrb[0].mxu0
      %v1426 = vadd.f32 0.0, %v1425
      %v1427 = vpop.f32.mrb[0].mxu0
      %v1428 = vpop.f32.mrb[0].mxu0
      %v1429 = vadd.f32 0.0, %v1428
      %v1430 = vpop.f32.mrb[0].mxu0
      %1431 = vmatprep.mubr.bf16.mxu0 0
      %1432 = vmatmul.mubr.bf16.gmra.mrb[0].mxu0 %v772
      %v1433 = vpop.f32.mrb[0].mxu0
      %v1434 = vadd.f32 0.0, %v1433
      %v1435 = vpop.f32.mrb[0].mxu0
      %v1436 = vpop.f32.mrb[0].mxu0
      %v1437 = vadd.f32 0.0, %v1436
      %v1438 = vpop.f32.mrb[0].mxu0
      %1439 = vmatprep.mubr.bf16.mxu0 0
      %1440 = vmatmul.mubr.bf16.gmra.mrb[0].mxu0 %v775
      %v1441 = vpop.f32.mrb[0].mxu0
      %v1442 = vadd.f32 0.0, %v1441
      %v1443 = vpop.f32.mrb[0].mxu0
      %v1444 = vpop.f32.mrb[0].mxu0
      %v1445 = vadd.f32 0.0, %v1444
      %v1446 = vpop.f32.mrb[0].mxu0
      %1447 = vmatprep.mubr.bf16.mxu0 0
      %1448 = vmatmul.mubr.bf16.gmra.mrb[0].mxu0 %v778
      %v1449 = vpop.f32.mrb[0].mxu0
      %v1450 = vadd.f32 0.0, %v1449
      %v1451 = vpop.f32.mrb[0].mxu0
      %v1452 = vpop.f32.mrb[0].mxu0
      %v1453 = vadd.f32 0.0, %v1452
      %v1454 = vpop.f32.mrb[0].mxu0
      %1455 = vmatprep.mubr.bf16.mxu0 0
      %1456 = vmatmul.mubr.bf16.gmra.mrb[0].mxu0 %v781
      %v1457 = vpop.f32.mrb[0].mxu0
      %v1458 = vadd.f32 0.0, %v1457
      %v1459 = vpop.f32.mrb[0].mxu0
      %v1460 = vpop.f32.mrb[0].mxu0
      %v1461 = vadd.f32 0.0, %v1460
      %v1462 = vpop.f32.mrb[0].mxu0
      %1463 = vmatprep.mubr.bf16.mxu0 0
      %1464 = vmatmul.mubr.bf16.gmra.mrb[0].mxu0 %v784
      %v1465 = vpop.f32.mrb[0].mxu0
      %v1466 = vadd.f32 0.0, %v1465
      %v1467 = vpop.f32.mrb[0].mxu0
      %v1468 = vpop.f32.mrb[0].mxu0
      %v1469 = vadd.f32 0.0, %v1468
      %v1470 = vpop.f32.mrb[0].mxu0
      %1471 = vmatprep.mubr.bf16.mxu0 0
      %1472 = vmatmul.mubr.bf16.gmra.mrb[0].mxu0 %v787
      %v1473 = vpop.f32.mrb[0].mxu0
      %v1474 = vadd.f32 0.0, %v1473
      %v1475 = vpop.f32.mrb[0].mxu0
      %v1476 = vpop.f32.mrb[0].mxu0
      %v1477 = vadd.f32 0.0, %v1476
      %v1478 = vpop.f32.mrb[0].mxu0
      %1479 = vmatprep.mubr.bf16.mxu0 0
      %1480 = vmatmul.mubr.bf16.gmra.mrb[0].mxu0 %v790
      %v1481 = vpop.f32.mrb[0].mxu0
      %v1482 = vadd.f32 0.0, %v1481
      %v1483 = vpop.f32.mrb[0].mxu0
      %v1484 = vpop.f32.mrb[0].mxu0
      %v1485 = vadd.f32 0.0, %v1484
      %v1486 = vpop.f32.mrb[0].mxu0
      %1487 = vmatprep.mubr.bf16.mxu0 0
      %1488 = vmatmul.mubr.bf16.gmra.mrb[0].mxu0 %v793
      %v1489 = vpop.f32.mrb[0].mxu0
      %v1490 = vadd.f32 0.0, %v1489
      %v1491 = vpop.f32.mrb[0].mxu0
      %v1492 = vpop.f32.mrb[0].mxu0
      %v1493 = vadd.f32 0.0, %v1492
      %v1494 = vpop.f32.mrb[0].mxu0
      %1495 = vmatprep.mubr.bf16.mxu0 0
      %1496 = vmatmul.mubr.bf16.gmra.mrb[0].mxu0 %v1338
      %v1497 = vpop.f32.mrb[0].mxu0
      %v1498 = vadd.f32 0.0, %v1497
      %v1499 = vpop.f32.mrb[0].mxu0
      %v1500 = vpop.f32.mrb[0].mxu0
      %v1501 = vadd.f32 0.0, %v1500
      %v1502 = vpop.f32.mrb[0].mxu0
      %1503 = vdwg.mxu0
      %v1504 = vadd.f32 %v1302, %v1378
      %v1505 = vadd.f32 %v1303, %v1381
      %v1506 = vadd.f32 %v1304, %v1386
      %v1507 = vadd.f32 %v1305, %v1389
      %v1508 = vadd.f32 %v1306, %v1394
      %v1509 = vadd.f32 %v1307, %v1397
      %v1510 = vadd.f32 %v1308, %v1402
      %v1511 = vadd.f32 %v1309, %v1405
      %v1512 = vadd.f32 %v1310, %v1410
      %v1513 = vadd.f32 %v1311, %v1413
      %v1514 = vadd.f32 %v1312, %v1418
      %v1515 = vadd.f32 %v1313, %v1421
      %v1516 = vadd.f32 %v1314, %v1426
      %v1517 = vadd.f32 %v1315, %v1429
      %v1518 = vadd.f32 %v1316, %v1434
      %v1519 = vadd.f32 %v1317, %v1437
      %v1520 = vadd.f32 %v1318, %v1442
      %v1521 = vadd.f32 %v1319, %v1445
      %v1522 = vadd.f32 %v1320, %v1450
      %v1523 = vadd.f32 %v1321, %v1453
      %v1524 = vadd.f32 %v1322, %v1458
      %v1525 = vadd.f32 %v1323, %v1461
      %v1526 = vadd.f32 %v1324, %v1466
      %v1527 = vadd.f32 %v1325, %v1469
      %v1528 = vadd.f32 %v1326, %v1474
      %v1529 = vadd.f32 %v1327, %v1477
      %v1530 = vadd.f32 %v1328, %v1482
      %v1531 = vadd.f32 %v1329, %v1485
      %v1532 = vadd.f32 %v1330, %v1490
      %v1533 = vadd.f32 %v1331, %v1493
      %v1534 = vadd.f32 %v1332, %v1498
      %v1535 = vadd.f32 %v1333, %v1501
      %v1539 = vrot.slane %v328, 1
      %v1540 = vrot.slane %v329, 1
      %v1541 = vsel %vm399, %v1539, %v1540
      %v1542 = vrot.slane %v330, 1
      %v1543 = vsel %vm399, %v1540, %v1542
      %v1546 = vpack.c.bf16 %v1543, %v1541
      %s1547 = scalar_lea.vmem %s1, 8
      %v1548 = vld [vmem:[%s1547] sm:$0x3]
      %v1550 = vsel %vm530, %v1546, 0
      %v1553 = vand.u32 %v1548, %v582
      %1555 = vmatprep.subr.bf16.mxu0 0
      %1556 = vmatpush1.bf16.msra.mxu0 %v1553
      %1557 = vmatprep.subr.bf16.mxu0 0
      %1558 = vmatpush1.bf16.msra.mxu0 0
      %1559 = vmatprep.subr.bf16.mxu0 0
      %1560 = vmatpush1.bf16.msra.mxu0 0
      %1561 = vmatprep.subr.bf16.mxu0 0
      %1562 = vmatpush1.bf16.msra.mxu0 0
      %1563 = vmatprep.subr.bf16.mxu0 0
      %1564 = vmatpush1.bf16.msra.mxu0 0
      %1565 = vmatprep.subr.bf16.mxu0 0
      %1566 = vmatpush1.bf16.msra.mxu0 0
      %1567 = vmatprep.subr.bf16.mxu0 0
      %1568 = vmatpush1.bf16.msra.mxu0 0
      %1569 = vmatprep.subr.bf16.mxu0 0
      %1570 = vmatpush1.bf16.msra.mxu0 0
      %1571 = vmatprep.subr.bf16.mxu0 0
      %1572 = vmatpush1.bf16.msra.mxu0 0
      %1573 = vmatprep.subr.bf16.mxu0 0
      %1574 = vmatpush1.bf16.msra.mxu0 0
      %1575 = vmatprep.subr.bf16.mxu0 0
      %1576 = vmatpush1.bf16.msra.mxu0 0
      %1577 = vmatprep.subr.bf16.mxu0 0
      %1578 = vmatpush1.bf16.msra.mxu0 0
      %1579 = vmatprep.subr.bf16.mxu0 0
      %1580 = vmatpush1.bf16.msra.mxu0 0
      %1581 = vmatprep.subr.bf16.mxu0 0
      %1582 = vmatpush1.bf16.msra.mxu0 0
      %1583 = vmatprep.subr.bf16.mxu0 0
      %1584 = vmatpush1.bf16.msra.mxu0 0
      %1585 = vmatprep.subr.bf16.mxu0 0
      %1586 = vmatpush1.bf16.msra.mxu0 0
      %1587 = vmatprep.mubr.bf16.mxu0 0
      %1588 = vmatmul.mubr.bf16.gmra.mrb[0].mxu0 %v535
      %v1589 = vpop.f32.mrb[0].mxu0
      %v1590 = vadd.f32 0.0, %v1589
      %v1591 = vpop.f32.mrb[0].mxu0
      %v1592 = vpop.f32.mrb[0].mxu0
      %v1593 = vadd.f32 0.0, %v1592
      %v1594 = vpop.f32.mrb[0].mxu0
      %1595 = vmatprep.mubr.bf16.mxu0 0
      %1596 = vmatmul.mubr.bf16.gmra.mrb[0].mxu0 %v538
      %v1597 = vpop.f32.mrb[0].mxu0
      %v1598 = vadd.f32 0.0, %v1597
      %v1599 = vpop.f32.mrb[0].mxu0
      %v1600 = vpop.f32.mrb[0].mxu0
      %v1601 = vadd.f32 0.0, %v1600
      %v1602 = vpop.f32.mrb[0].mxu0
      %1603 = vmatprep.mubr.bf16.mxu0 0
      %1604 = vmatmul.mubr.bf16.gmra.mrb[0].mxu0 %v541
      %v1605 = vpop.f32.mrb[0].mxu0
      %v1606 = vadd.f32 0.0, %v1605
      %v1607 = vpop.f32.mrb[0].mxu0
      %v1608 = vpop.f32.mrb[0].mxu0
      %v1609 = vadd.f32 0.0, %v1608
      %v1610 = vpop.f32.mrb[0].mxu0
      %1611 = vmatprep.mubr.bf16.mxu0 0
      %1612 = vmatmul.mubr.bf16.gmra.mrb[0].mxu0 %v544
      %v1613 = vpop.f32.mrb[0].mxu0
      %v1614 = vadd.f32 0.0, %v1613
      %v1615 = vpop.f32.mrb[0].mxu0
      %v1616 = vpop.f32.mrb[0].mxu0
      %v1617 = vadd.f32 0.0, %v1616
      %v1618 = vpop.f32.mrb[0].mxu0
      %1619 = vmatprep.mubr.bf16.mxu0 0
      %1620 = vmatmul.mubr.bf16.gmra.mrb[0].mxu0 %v547
      %v1621 = vpop.f32.mrb[0].mxu0
      %v1622 = vadd.f32 0.0, %v1621
      %v1623 = vpop.f32.mrb[0].mxu0
      %v1624 = vpop.f32.mrb[0].mxu0
      %v1625 = vadd.f32 0.0, %v1624
      %v1626 = vpop.f32.mrb[0].mxu0
      %1627 = vmatprep.mubr.bf16.mxu0 0
      %1628 = vmatmul.mubr.bf16.gmra.mrb[0].mxu0 %v550
      %v1629 = vpop.f32.mrb[0].mxu0
      %v1630 = vadd.f32 0.0, %v1629
      %v1631 = vpop.f32.mrb[0].mxu0
      %v1632 = vpop.f32.mrb[0].mxu0
      %v1633 = vadd.f32 0.0, %v1632
      %v1634 = vpop.f32.mrb[0].mxu0
      %1635 = vmatprep.mubr.bf16.mxu0 0
      %1636 = vmatmul.mubr.bf16.gmra.mrb[0].mxu0 %v553
      %v1637 = vpop.f32.mrb[0].mxu0
      %v1638 = vadd.f32 0.0, %v1637
      %v1639 = vpop.f32.mrb[0].mxu0
      %v1640 = vpop.f32.mrb[0].mxu0
      %v1641 = vadd.f32 0.0, %v1640
      %v1642 = vpop.f32.mrb[0].mxu0
      %1643 = vmatprep.mubr.bf16.mxu0 0
      %1644 = vmatmul.mubr.bf16.gmra.mrb[0].mxu0 %v556
      %v1645 = vpop.f32.mrb[0].mxu0
      %v1646 = vadd.f32 0.0, %v1645
      %v1647 = vpop.f32.mrb[0].mxu0
      %v1648 = vpop.f32.mrb[0].mxu0
      %v1649 = vadd.f32 0.0, %v1648
      %v1650 = vpop.f32.mrb[0].mxu0
      %1651 = vmatprep.mubr.bf16.mxu0 0
      %1652 = vmatmul.mubr.bf16.gmra.mrb[0].mxu0 %v559
      %v1653 = vpop.f32.mrb[0].mxu0
      %v1654 = vadd.f32 0.0, %v1653
      %v1655 = vpop.f32.mrb[0].mxu0
      %v1656 = vpop.f32.mrb[0].mxu0
      %v1657 = vadd.f32 0.0, %v1656
      %v1658 = vpop.f32.mrb[0].mxu0
      %1659 = vmatprep.mubr.bf16.mxu0 0
      %1660 = vmatmul.mubr.bf16.gmra.mrb[0].mxu0 %v562
      %v1661 = vpop.f32.mrb[0].mxu0
      %v1662 = vadd.f32 0.0, %v1661
      %v1663 = vpop.f32.mrb[0].mxu0
      %v1664 = vpop.f32.mrb[0].mxu0
      %v1665 = vadd.f32 0.0, %v1664
      %v1666 = vpop.f32.mrb[0].mxu0
      %1667 = vmatprep.mubr.bf16.mxu0 0
      %1668 = vmatmul.mubr.bf16.gmra.mrb[0].mxu0 %v565
      %v1669 = vpop.f32.mrb[0].mxu0
      %v1670 = vadd.f32 0.0, %v1669
      %v1671 = vpop.f32.mrb[0].mxu0
      %v1672 = vpop.f32.mrb[0].mxu0
      %v1673 = vadd.f32 0.0, %v1672
      %v1674 = vpop.f32.mrb[0].mxu0
      %1675 = vmatprep.mubr.bf16.mxu0 0
      %1676 = vmatmul.mubr.bf16.gmra.mrb[0].mxu0 %v568
      %v1677 = vpop.f32.mrb[0].mxu0
      %v1678 = vadd.f32 0.0, %v1677
      %v1679 = vpop.f32.mrb[0].mxu0
      %v1680 = vpop.f32.mrb[0].mxu0
      %v1681 = vadd.f32 0.0, %v1680
      %v1682 = vpop.f32.mrb[0].mxu0
      %1683 = vmatprep.mubr.bf16.mxu0 0
      %1684 = vmatmul.mubr.bf16.gmra.mrb[0].mxu0 %v571
      %v1685 = vpop.f32.mrb[0].mxu0
      %v1686 = vadd.f32 0.0, %v1685
      %v1687 = vpop.f32.mrb[0].mxu0
      %v1688 = vpop.f32.mrb[0].mxu0
      %v1689 = vadd.f32 0.0, %v1688
      %v1690 = vpop.f32.mrb[0].mxu0
      %1691 = vmatprep.mubr.bf16.mxu0 0
      %1692 = vmatmul.mubr.bf16.gmra.mrb[0].mxu0 %v574
      %v1693 = vpop.f32.mrb[0].mxu0
      %v1694 = vadd.f32 0.0, %v1693
      %v1695 = vpop.f32.mrb[0].mxu0
      %v1696 = vpop.f32.mrb[0].mxu0
      %v1697 = vadd.f32 0.0, %v1696
      %v1698 = vpop.f32.mrb[0].mxu0
      %1699 = vmatprep.mubr.bf16.mxu0 0
      %1700 = vmatmul.mubr.bf16.gmra.mrb[0].mxu0 %v577
      %v1701 = vpop.f32.mrb[0].mxu0
      %v1702 = vadd.f32 0.0, %v1701
      %v1703 = vpop.f32.mrb[0].mxu0
      %v1704 = vpop.f32.mrb[0].mxu0
      %v1705 = vadd.f32 0.0, %v1704
      %v1706 = vpop.f32.mrb[0].mxu0
      %1707 = vmatprep.mubr.bf16.mxu0 0
      %1708 = vmatmul.mubr.bf16.gmra.mrb[0].mxu0 %v1550
      %v1709 = vpop.f32.mrb[0].mxu0
      %v1710 = vadd.f32 0.0, %v1709
      %v1711 = vpop.f32.mrb[0].mxu0
      %v1712 = vpop.f32.mrb[0].mxu0
      %v1713 = vadd.f32 0.0, %v1712
      %v1714 = vpop.f32.mrb[0].mxu0
      %1715 = vdwg.mxu0
      %v1716 = vadd.f32 %v1504, %v1590
      %v1717 = vadd.f32 %v1505, %v1593
      %v1718 = vadd.f32 %v1506, %v1598
      %v1719 = vadd.f32 %v1507, %v1601
      %v1720 = vadd.f32 %v1508, %v1606
      %v1721 = vadd.f32 %v1509, %v1609
      %v1722 = vadd.f32 %v1510, %v1614
      %v1723 = vadd.f32 %v1511, %v1617
      %v1724 = vadd.f32 %v1512, %v1622
      %v1725 = vadd.f32 %v1513, %v1625
      %v1726 = vadd.f32 %v1514, %v1630
      %v1727 = vadd.f32 %v1515, %v1633
      %v1728 = vadd.f32 %v1516, %v1638
      %v1729 = vadd.f32 %v1517, %v1641
      %v1730 = vadd.f32 %v1518, %v1646
      %v1731 = vadd.f32 %v1519, %v1649
      %v1732 = vadd.f32 %v1520, %v1654
      %v1733 = vadd.f32 %v1521, %v1657
      %v1734 = vadd.f32 %v1522, %v1662
      %v1735 = vadd.f32 %v1523, %v1665
      %v1736 = vadd.f32 %v1524, %v1670
      %v1737 = vadd.f32 %v1525, %v1673
      %v1738 = vadd.f32 %v1526, %v1678
      %v1739 = vadd.f32 %v1527, %v1681
      %v1740 = vadd.f32 %v1528, %v1686
      %v1741 = vadd.f32 %v1529, %v1689
      %v1742 = vadd.f32 %v1530, %v1694
      %v1743 = vadd.f32 %v1531, %v1697
      %v1744 = vadd.f32 %v1532, %v1702
      %v1745 = vadd.f32 %v1533, %v1705
      %v1746 = vadd.f32 %v1534, %v1710
      %v1747 = vadd.f32 %v1535, %v1713
      %v1748 = vrot.slane %v328, 2
      %v1749 = vrot.slane %v329, 2
      %v1750 = vsel %vm959, %v1748, %v1749
      %v1751 = vrot.slane %v330, 2
      %v1752 = vsel %vm959, %v1749, %v1751
      %v1755 = vpack.c.bf16 %v1752, %v1750
      %s1756 = scalar_lea.vmem %s1, 10
      %v1757 = vld [vmem:[%s1756] sm:$0x3]
      %v1759 = vsel %vm530, %v1755, 0
      %v1762 = vand.u32 %v1757, %v582
      %1764 = vmatprep.subr.bf16.mxu0 0
      %1765 = vmatpush1.bf16.msra.mxu0 %v1762
      %1766 = vmatprep.subr.bf16.mxu0 0
      %1767 = vmatpush1.bf16.msra.mxu0 0
      %1768 = vmatprep.subr.bf16.mxu0 0
      %1769 = vmatpush1.bf16.msra.mxu0 0
      %1770 = vmatprep.subr.bf16.mxu0 0
      %1771 = vmatpush1.bf16.msra.mxu0 0
      %1772 = vmatprep.subr.bf16.mxu0 0
      %1773 = vmatpush1.bf16.msra.mxu0 0
      %1774 = vmatprep.subr.bf16.mxu0 0
      %1775 = vmatpush1.bf16.msra.mxu0 0
      %1776 = vmatprep.subr.bf16.mxu0 0
      %1777 = vmatpush1.bf16.msra.mxu0 0
      %1778 = vmatprep.subr.bf16.mxu0 0
      %1779 = vmatpush1.bf16.msra.mxu0 0
      %1780 = vmatprep.subr.bf16.mxu0 0
      %1781 = vmatpush1.bf16.msra.mxu0 0
      %1782 = vmatprep.subr.bf16.mxu0 0
      %1783 = vmatpush1.bf16.msra.mxu0 0
      %1784 = vmatprep.subr.bf16.mxu0 0
      %1785 = vmatpush1.bf16.msra.mxu0 0
      %1786 = vmatprep.subr.bf16.mxu0 0
      %1787 = vmatpush1.bf16.msra.mxu0 0
      %1788 = vmatprep.subr.bf16.mxu0 0
      %1789 = vmatpush1.bf16.msra.mxu0 0
      %1790 = vmatprep.subr.bf16.mxu0 0
      %1791 = vmatpush1.bf16.msra.mxu0 0
      %1792 = vmatprep.subr.bf16.mxu0 0
      %1793 = vmatpush1.bf16.msra.mxu0 0
      %1794 = vmatprep.subr.bf16.mxu0 0
      %1795 = vmatpush1.bf16.msra.mxu0 0
      %1796 = vmatprep.mubr.bf16.mxu0 0
      %1797 = vmatmul.mubr.bf16.gmra.mrb[0].mxu0 %v1094
      %v1798 = vpop.f32.mrb[0].mxu0
      %v1799 = vadd.f32 0.0, %v1798
      %v1800 = vpop.f32.mrb[0].mxu0
      %v1801 = vpop.f32.mrb[0].mxu0
      %v1802 = vadd.f32 0.0, %v1801
      %v1803 = vpop.f32.mrb[0].mxu0
      %1804 = vmatprep.mubr.bf16.mxu0 0
      %1805 = vmatmul.mubr.bf16.gmra.mrb[0].mxu0 %v1097
      %v1806 = vpop.f32.mrb[0].mxu0
      %v1807 = vadd.f32 0.0, %v1806
      %v1808 = vpop.f32.mrb[0].mxu0
      %v1809 = vpop.f32.mrb[0].mxu0
      %v1810 = vadd.f32 0.0, %v1809
      %v1811 = vpop.f32.mrb[0].mxu0
      %1812 = vmatprep.mubr.bf16.mxu0 0
      %1813 = vmatmul.mubr.bf16.gmra.mrb[0].mxu0 %v1100
      %v1814 = vpop.f32.mrb[0].mxu0
      %v1815 = vadd.f32 0.0, %v1814
      %v1816 = vpop.f32.mrb[0].mxu0
      %v1817 = vpop.f32.mrb[0].mxu0
      %v1818 = vadd.f32 0.0, %v1817
      %v1819 = vpop.f32.mrb[0].mxu0
      %1820 = vmatprep.mubr.bf16.mxu0 0
      %1821 = vmatmul.mubr.bf16.gmra.mrb[0].mxu0 %v1103
      %v1822 = vpop.f32.mrb[0].mxu0
      %v1823 = vadd.f32 0.0, %v1822
      %v1824 = vpop.f32.mrb[0].mxu0
      %v1825 = vpop.f32.mrb[0].mxu0
      %v1826 = vadd.f32 0.0, %v1825
      %v1827 = vpop.f32.mrb[0].mxu0
      %1828 = vmatprep.mubr.bf16.mxu0 0
      %1829 = vmatmul.mubr.bf16.gmra.mrb[0].mxu0 %v1106
      %v1830 = vpop.f32.mrb[0].mxu0
      %v1831 = vadd.f32 0.0, %v1830
      %v1832 = vpop.f32.mrb[0].mxu0
      %v1833 = vpop.f32.mrb[0].mxu0
      %v1834 = vadd.f32 0.0, %v1833
      %v1835 = vpop.f32.mrb[0].mxu0
      %1836 = vmatprep.mubr.bf16.mxu0 0
      %1837 = vmatmul.mubr.bf16.gmra.mrb[0].mxu0 %v1109
      %v1838 = vpop.f32.mrb[0].mxu0
      %v1839 = vadd.f32 0.0, %v1838
      %v1840 = vpop.f32.mrb[0].mxu0
      %v1841 = vpop.f32.mrb[0].mxu0
      %v1842 = vadd.f32 0.0, %v1841
      %v1843 = vpop.f32.mrb[0].mxu0
      %1844 = vmatprep.mubr.bf16.mxu0 0
      %1845 = vmatmul.mubr.bf16.gmra.mrb[0].mxu0 %v1112
      %v1846 = vpop.f32.mrb[0].mxu0
      %v1847 = vadd.f32 0.0, %v1846
      %v1848 = vpop.f32.mrb[0].mxu0
      %v1849 = vpop.f32.mrb[0].mxu0
      %v1850 = vadd.f32 0.0, %v1849
      %v1851 = vpop.f32.mrb[0].mxu0
      %1852 = vmatprep.mubr.bf16.mxu0 0
      %1853 = vmatmul.mubr.bf16.gmra.mrb[0].mxu0 %v1115
      %v1854 = vpop.f32.mrb[0].mxu0
      %v1855 = vadd.f32 0.0, %v1854
      %v1856 = vpop.f32.mrb[0].mxu0
      %v1857 = vpop.f32.mrb[0].mxu0
      %v1858 = vadd.f32 0.0, %v1857
      %v1859 = vpop.f32.mrb[0].mxu0
      %1860 = vmatprep.mubr.bf16.mxu0 0
      %1861 = vmatmul.mubr.bf16.gmra.mrb[0].mxu0 %v1118
      %v1862 = vpop.f32.mrb[0].mxu0
      %v1863 = vadd.f32 0.0, %v1862
      %v1864 = vpop.f32.mrb[0].mxu0
      %v1865 = vpop.f32.mrb[0].mxu0
      %v1866 = vadd.f32 0.0, %v1865
      %v1867 = vpop.f32.mrb[0].mxu0
      %1868 = vmatprep.mubr.bf16.mxu0 0
      %1869 = vmatmul.mubr.bf16.gmra.mrb[0].mxu0 %v1121
      %v1870 = vpop.f32.mrb[0].mxu0
      %v1871 = vadd.f32 0.0, %v1870
      %v1872 = vpop.f32.mrb[0].mxu0
      %v1873 = vpop.f32.mrb[0].mxu0
      %v1874 = vadd.f32 0.0, %v1873
      %v1875 = vpop.f32.mrb[0].mxu0
      %1876 = vmatprep.mubr.bf16.mxu0 0
      %1877 = vmatmul.mubr.bf16.gmra.mrb[0].mxu0 %v1124
      %v1878 = vpop.f32.mrb[0].mxu0
      %v1879 = vadd.f32 0.0, %v1878
      %v1880 = vpop.f32.mrb[0].mxu0
      %v1881 = vpop.f32.mrb[0].mxu0
      %v1882 = vadd.f32 0.0, %v1881
      %v1883 = vpop.f32.mrb[0].mxu0
      %1884 = vmatprep.mubr.bf16.mxu0 0
      %1885 = vmatmul.mubr.bf16.gmra.mrb[0].mxu0 %v1127
      %v1886 = vpop.f32.mrb[0].mxu0
      %v1887 = vadd.f32 0.0, %v1886
      %v1888 = vpop.f32.mrb[0].mxu0
      %v1889 = vpop.f32.mrb[0].mxu0
      %v1890 = vadd.f32 0.0, %v1889
      %v1891 = vpop.f32.mrb[0].mxu0
      %1892 = vmatprep.mubr.bf16.mxu0 0
      %1893 = vmatmul.mubr.bf16.gmra.mrb[0].mxu0 %v1130
      %v1894 = vpop.f32.mrb[0].mxu0
      %v1895 = vadd.f32 0.0, %v1894
      %v1896 = vpop.f32.mrb[0].mxu0
      %v1897 = vpop.f32.mrb[0].mxu0
      %v1898 = vadd.f32 0.0, %v1897
      %v1899 = vpop.f32.mrb[0].mxu0
      %1900 = vmatprep.mubr.bf16.mxu0 0
      %1901 = vmatmul.mubr.bf16.gmra.mrb[0].mxu0 %v1133
      %v1902 = vpop.f32.mrb[0].mxu0
      %v1903 = vadd.f32 0.0, %v1902
      %v1904 = vpop.f32.mrb[0].mxu0
      %v1905 = vpop.f32.mrb[0].mxu0
      %v1906 = vadd.f32 0.0, %v1905
      %v1907 = vpop.f32.mrb[0].mxu0
      %1908 = vmatprep.mubr.bf16.mxu0 0
      %1909 = vmatmul.mubr.bf16.gmra.mrb[0].mxu0 %v1136
      %v1910 = vpop.f32.mrb[0].mxu0
      %v1911 = vadd.f32 0.0, %v1910
      %v1912 = vpop.f32.mrb[0].mxu0
      %v1913 = vpop.f32.mrb[0].mxu0
      %v1914 = vadd.f32 0.0, %v1913
      %v1915 = vpop.f32.mrb[0].mxu0
      %1916 = vmatprep.mubr.bf16.mxu0 0
      %1917 = vmatmul.mubr.bf16.gmra.mrb[0].mxu0 %v1759
      %v1918 = vpop.f32.mrb[0].mxu0
      %v1919 = vadd.f32 0.0, %v1918
      %v1920 = vpop.f32.mrb[0].mxu0
      %v1921 = vpop.f32.mrb[0].mxu0
      %v1922 = vadd.f32 0.0, %v1921
      %v1923 = vpop.f32.mrb[0].mxu0
      %1924 = vdwg.mxu0
      %v1925 = vadd.f32 %v1716, %v1799
      %v1926 = vadd.f32 %v1717, %v1802
      %v1927 = vadd.f32 %v1718, %v1807
      %v1928 = vadd.f32 %v1719, %v1810
      %v1929 = vadd.f32 %v1720, %v1815
      %v1930 = vadd.f32 %v1721, %v1818
      %v1931 = vadd.f32 %v1722, %v1823
      %v1932 = vadd.f32 %v1723, %v1826
      %v1933 = vadd.f32 %v1724, %v1831
      %v1934 = vadd.f32 %v1725, %v1834
      %v1935 = vadd.f32 %v1726, %v1839
      %v1936 = vadd.f32 %v1727, %v1842
      %v1937 = vadd.f32 %v1728, %v1847
      %v1938 = vadd.f32 %v1729, %v1850
      %v1939 = vadd.f32 %v1730, %v1855
      %v1940 = vadd.f32 %v1731, %v1858
      %v1941 = vadd.f32 %v1732, %v1863
      %v1942 = vadd.f32 %v1733, %v1866
      %v1943 = vadd.f32 %v1734, %v1871
      %v1944 = vadd.f32 %v1735, %v1874
      %v1945 = vadd.f32 %v1736, %v1879
      %v1946 = vadd.f32 %v1737, %v1882
      %v1947 = vadd.f32 %v1738, %v1887
      %v1948 = vadd.f32 %v1739, %v1890
      %v1949 = vadd.f32 %v1740, %v1895
      %v1950 = vadd.f32 %v1741, %v1898
      %v1951 = vadd.f32 %v1742, %v1903
      %v1952 = vadd.f32 %v1743, %v1906
      %v1953 = vadd.f32 %v1744, %v1911
      %v1954 = vadd.f32 %v1745, %v1914
      %v1955 = vadd.f32 %v1746, %v1919
      %v1956 = vadd.f32 %v1747, %v1922
      %v1957 = vpack.c.bf16 %v332, %v331
      %s1958 = scalar_lea.vmem %s1, 12
      %v1959 = vld [vmem:[%s1958] sm:$0x3]
      %v1961 = vsel %vm530, %v1957, 0
      %v1964 = vand.u32 %v1959, %v582
      %1966 = vmatprep.subr.bf16.mxu0 0
      %1967 = vmatpush1.bf16.msra.mxu0 %v1964
      %1968 = vmatprep.subr.bf16.mxu0 0
      %1969 = vmatpush1.bf16.msra.mxu0 0
      %1970 = vmatprep.subr.bf16.mxu0 0
      %1971 = vmatpush1.bf16.msra.mxu0 0
      %1972 = vmatprep.subr.bf16.mxu0 0
      %1973 = vmatpush1.bf16.msra.mxu0 0
      %1974 = vmatprep.subr.bf16.mxu0 0
      %1975 = vmatpush1.bf16.msra.mxu0 0
      %1976 = vmatprep.subr.bf16.mxu0 0
      %1977 = vmatpush1.bf16.msra.mxu0 0
      %1978 = vmatprep.subr.bf16.mxu0 0
      %1979 = vmatpush1.bf16.msra.mxu0 0
      %1980 = vmatprep.subr.bf16.mxu0 0
      %1981 = vmatpush1.bf16.msra.mxu0 0
      %1982 = vmatprep.subr.bf16.mxu0 0
      %1983 = vmatpush1.bf16.msra.mxu0 0
      %1984 = vmatprep.subr.bf16.mxu0 0
      %1985 = vmatpush1.bf16.msra.mxu0 0
      %1986 = vmatprep.subr.bf16.mxu0 0
      %1987 = vmatpush1.bf16.msra.mxu0 0
      %1988 = vmatprep.subr.bf16.mxu0 0
      %1989 = vmatpush1.bf16.msra.mxu0 0
      %1990 = vmatprep.subr.bf16.mxu0 0
      %1991 = vmatpush1.bf16.msra.mxu0 0
      %1992 = vmatprep.subr.bf16.mxu0 0
      %1993 = vmatpush1.bf16.msra.mxu0 0
      %1994 = vmatprep.subr.bf16.mxu0 0
      %1995 = vmatpush1.bf16.msra.mxu0 0
      %1996 = vmatprep.subr.bf16.mxu0 0
      %1997 = vmatpush1.bf16.msra.mxu0 0
      %1998 = vmatprep.mubr.bf16.mxu0 0
      %1999 = vmatmul.mubr.bf16.gmra.mrb[0].mxu0 %v754
      %v2000 = vpop.f32.mrb[0].mxu0
      %v2001 = vadd.f32 0.0, %v2000
      %v2002 = vpop.f32.mrb[0].mxu0
      %v2003 = vpop.f32.mrb[0].mxu0
      %v2004 = vadd.f32 0.0, %v2003
      %v2005 = vpop.f32.mrb[0].mxu0
      %2006 = vmatprep.mubr.bf16.mxu0 0
      %2007 = vmatmul.mubr.bf16.gmra.mrb[0].mxu0 %v757
      %v2008 = vpop.f32.mrb[0].mxu0
      %v2009 = vadd.f32 0.0, %v2008
      %v2010 = vpop.f32.mrb[0].mxu0
      %v2011 = vpop.f32.mrb[0].mxu0
      %v2012 = vadd.f32 0.0, %v2011
      %v2013 = vpop.f32.mrb[0].mxu0
      %2014 = vmatprep.mubr.bf16.mxu0 0
      %2015 = vmatmul.mubr.bf16.gmra.mrb[0].mxu0 %v760
      %v2016 = vpop.f32.mrb[0].mxu0
      %v2017 = vadd.f32 0.0, %v2016
      %v2018 = vpop.f32.mrb[0].mxu0
      %v2019 = vpop.f32.mrb[0].mxu0
      %v2020 = vadd.f32 0.0, %v2019
      %v2021 = vpop.f32.mrb[0].mxu0
      %2022 = vmatprep.mubr.bf16.mxu0 0
      %2023 = vmatmul.mubr.bf16.gmra.mrb[0].mxu0 %v763
      %v2024 = vpop.f32.mrb[0].mxu0
      %v2025 = vadd.f32 0.0, %v2024
      %v2026 = vpop.f32.mrb[0].mxu0
      %v2027 = vpop.f32.mrb[0].mxu0
      %v2028 = vadd.f32 0.0, %v2027
      %v2029 = vpop.f32.mrb[0].mxu0
      %2030 = vmatprep.mubr.bf16.mxu0 0
      %2031 = vmatmul.mubr.bf16.gmra.mrb[0].mxu0 %v766
      %v2032 = vpop.f32.mrb[0].mxu0
      %v2033 = vadd.f32 0.0, %v2032
      %v2034 = vpop.f32.mrb[0].mxu0
      %v2035 = vpop.f32.mrb[0].mxu0
      %v2036 = vadd.f32 0.0, %v2035
      %v2037 = vpop.f32.mrb[0].mxu0
      %2038 = vmatprep.mubr.bf16.mxu0 0
      %2039 = vmatmul.mubr.bf16.gmra.mrb[0].mxu0 %v769
      %v2040 = vpop.f32.mrb[0].mxu0
      %v2041 = vadd.f32 0.0, %v2040
      %v2042 = vpop.f32.mrb[0].mxu0
      %v2043 = vpop.f32.mrb[0].mxu0
      %v2044 = vadd.f32 0.0, %v2043
      %v2045 = vpop.f32.mrb[0].mxu0
      %2046 = vmatprep.mubr.bf16.mxu0 0
      %2047 = vmatmul.mubr.bf16.gmra.mrb[0].mxu0 %v772
      %v2048 = vpop.f32.mrb[0].mxu0
      %v2049 = vadd.f32 0.0, %v2048
      %v2050 = vpop.f32.mrb[0].mxu0
      %v2051 = vpop.f32.mrb[0].mxu0
      %v2052 = vadd.f32 0.0, %v2051
      %v2053 = vpop.f32.mrb[0].mxu0
      %2054 = vmatprep.mubr.bf16.mxu0 0
      %2055 = vmatmul.mubr.bf16.gmra.mrb[0].mxu0 %v775
      %v2056 = vpop.f32.mrb[0].mxu0
      %v2057 = vadd.f32 0.0, %v2056
      %v2058 = vpop.f32.mrb[0].mxu0
      %v2059 = vpop.f32.mrb[0].mxu0
      %v2060 = vadd.f32 0.0, %v2059
      %v2061 = vpop.f32.mrb[0].mxu0
      %2062 = vmatprep.mubr.bf16.mxu0 0
      %2063 = vmatmul.mubr.bf16.gmra.mrb[0].mxu0 %v778
      %v2064 = vpop.f32.mrb[0].mxu0
      %v2065 = vadd.f32 0.0, %v2064
      %v2066 = vpop.f32.mrb[0].mxu0
      %v2067 = vpop.f32.mrb[0].mxu0
      %v2068 = vadd.f32 0.0, %v2067
      %v2069 = vpop.f32.mrb[0].mxu0
      %2070 = vmatprep.mubr.bf16.mxu0 0
      %2071 = vmatmul.mubr.bf16.gmra.mrb[0].mxu0 %v781
      %v2072 = vpop.f32.mrb[0].mxu0
      %v2073 = vadd.f32 0.0, %v2072
      %v2074 = vpop.f32.mrb[0].mxu0
      %v2075 = vpop.f32.mrb[0].mxu0
      %v2076 = vadd.f32 0.0, %v2075
      %v2077 = vpop.f32.mrb[0].mxu0
      %2078 = vmatprep.mubr.bf16.mxu0 0
      %2079 = vmatmul.mubr.bf16.gmra.mrb[0].mxu0 %v784
      %v2080 = vpop.f32.mrb[0].mxu0
      %v2081 = vadd.f32 0.0, %v2080
      %v2082 = vpop.f32.mrb[0].mxu0
      %v2083 = vpop.f32.mrb[0].mxu0
      %v2084 = vadd.f32 0.0, %v2083
      %v2085 = vpop.f32.mrb[0].mxu0
      %2086 = vmatprep.mubr.bf16.mxu0 0
      %2087 = vmatmul.mubr.bf16.gmra.mrb[0].mxu0 %v787
      %v2088 = vpop.f32.mrb[0].mxu0
      %v2089 = vadd.f32 0.0, %v2088
      %v2090 = vpop.f32.mrb[0].mxu0
      %v2091 = vpop.f32.mrb[0].mxu0
      %v2092 = vadd.f32 0.0, %v2091
      %v2093 = vpop.f32.mrb[0].mxu0
      %2094 = vmatprep.mubr.bf16.mxu0 0
      %2095 = vmatmul.mubr.bf16.gmra.mrb[0].mxu0 %v790
      %v2096 = vpop.f32.mrb[0].mxu0
      %v2097 = vadd.f32 0.0, %v2096
      %v2098 = vpop.f32.mrb[0].mxu0
      %v2099 = vpop.f32.mrb[0].mxu0
      %v2100 = vadd.f32 0.0, %v2099
      %v2101 = vpop.f32.mrb[0].mxu0
      %2102 = vmatprep.mubr.bf16.mxu0 0
      %2103 = vmatmul.mubr.bf16.gmra.mrb[0].mxu0 %v793
      %v2104 = vpop.f32.mrb[0].mxu0
      %v2105 = vadd.f32 0.0, %v2104
      %v2106 = vpop.f32.mrb[0].mxu0
      %v2107 = vpop.f32.mrb[0].mxu0
      %v2108 = vadd.f32 0.0, %v2107
      %v2109 = vpop.f32.mrb[0].mxu0
      %2110 = vmatprep.mubr.bf16.mxu0 0
      %2111 = vmatmul.mubr.bf16.gmra.mrb[0].mxu0 %v1338
      %v2112 = vpop.f32.mrb[0].mxu0
      %v2113 = vadd.f32 0.0, %v2112
      %v2114 = vpop.f32.mrb[0].mxu0
      %v2115 = vpop.f32.mrb[0].mxu0
      %v2116 = vadd.f32 0.0, %v2115
      %v2117 = vpop.f32.mrb[0].mxu0
      %2118 = vmatprep.mubr.bf16.mxu0 0
      %2119 = vmatmul.mubr.bf16.gmra.mrb[0].mxu0 %v1961
      %v2120 = vpop.f32.mrb[0].mxu0
      %v2121 = vadd.f32 0.0, %v2120
      %v2122 = vpop.f32.mrb[0].mxu0
      %v2123 = vpop.f32.mrb[0].mxu0
      %v2124 = vadd.f32 0.0, %v2123
      %v2125 = vpop.f32.mrb[0].mxu0
      %2126 = vdwg.mxu0
      %v2127 = vadd.f32 %v1925, %v2001
      %v2128 = vadd.f32 %v1926, %v2004
      %v2129 = vadd.f32 %v1927, %v2009
      %v2130 = vadd.f32 %v1928, %v2012
      %v2131 = vadd.f32 %v1929, %v2017
      %v2132 = vadd.f32 %v1930, %v2020
      %v2133 = vadd.f32 %v1931, %v2025
      %v2134 = vadd.f32 %v1932, %v2028
      %v2135 = vadd.f32 %v1933, %v2033
      %v2136 = vadd.f32 %v1934, %v2036
      %v2137 = vadd.f32 %v1935, %v2041
      %v2138 = vadd.f32 %v1936, %v2044
      %v2139 = vadd.f32 %v1937, %v2049
      %v2140 = vadd.f32 %v1938, %v2052
      %v2141 = vadd.f32 %v1939, %v2057
      %v2142 = vadd.f32 %v1940, %v2060
      %v2143 = vadd.f32 %v1941, %v2065
      %v2144 = vadd.f32 %v1942, %v2068
      %v2145 = vadd.f32 %v1943, %v2073
      %v2146 = vadd.f32 %v1944, %v2076
      %v2147 = vadd.f32 %v1945, %v2081
      %v2148 = vadd.f32 %v1946, %v2084
      %v2149 = vadd.f32 %v1947, %v2089
      %v2150 = vadd.f32 %v1948, %v2092
      %v2151 = vadd.f32 %v1949, %v2097
      %v2152 = vadd.f32 %v1950, %v2100
      %v2153 = vadd.f32 %v1951, %v2105
      %v2154 = vadd.f32 %v1952, %v2108
      %v2155 = vadd.f32 %v1953, %v2113
      %v2156 = vadd.f32 %v1954, %v2116
      %v2157 = vadd.f32 %v1955, %v2121
      %v2158 = vadd.f32 %v1956, %v2124
      %v2162 = vrot.slane %v331, 1
      %v2163 = vrot.slane %v332, 1
      %v2164 = vsel %vm399, %v2162, %v2163
      %v2165 = vrot.slane %v333, 1
      %v2166 = vsel %vm399, %v2163, %v2165
      %v2169 = vpack.c.bf16 %v2166, %v2164
      %s2170 = scalar_lea.vmem %s1, 14
      %v2171 = vld [vmem:[%s2170] sm:$0x3]
      %v2173 = vsel %vm530, %v2169, 0
      %v2176 = vand.u32 %v2171, %v582
      %2178 = vmatprep.subr.bf16.mxu0 0
      %2179 = vmatpush1.bf16.msra.mxu0 %v2176
      %2180 = vmatprep.subr.bf16.mxu0 0
      %2181 = vmatpush1.bf16.msra.mxu0 0
      %2182 = vmatprep.subr.bf16.mxu0 0
      %2183 = vmatpush1.bf16.msra.mxu0 0
      %2184 = vmatprep.subr.bf16.mxu0 0
      %2185 = vmatpush1.bf16.msra.mxu0 0
      %2186 = vmatprep.subr.bf16.mxu0 0
      %2187 = vmatpush1.bf16.msra.mxu0 0
      %2188 = vmatprep.subr.bf16.mxu0 0
      %2189 = vmatpush1.bf16.msra.mxu0 0
      %2190 = vmatprep.subr.bf16.mxu0 0
      %2191 = vmatpush1.bf16.msra.mxu0 0
      %2192 = vmatprep.subr.bf16.mxu0 0
      %2193 = vmatpush1.bf16.msra.mxu0 0
      %2194 = vmatprep.subr.bf16.mxu0 0
      %2195 = vmatpush1.bf16.msra.mxu0 0
      %2196 = vmatprep.subr.bf16.mxu0 0
      %2197 = vmatpush1.bf16.msra.mxu0 0
      %2198 = vmatprep.subr.bf16.mxu0 0
      %2199 = vmatpush1.bf16.msra.mxu0 0
      %2200 = vmatprep.subr.bf16.mxu0 0
      %2201 = vmatpush1.bf16.msra.mxu0 0
      %2202 = vmatprep.subr.bf16.mxu0 0
      %2203 = vmatpush1.bf16.msra.mxu0 0
      %2204 = vmatprep.subr.bf16.mxu0 0
      %2205 = vmatpush1.bf16.msra.mxu0 0
      %2206 = vmatprep.subr.bf16.mxu0 0
      %2207 = vmatpush1.bf16.msra.mxu0 0
      %2208 = vmatprep.subr.bf16.mxu0 0
      %2209 = vmatpush1.bf16.msra.mxu0 0
      %2210 = vmatprep.mubr.bf16.mxu0 0
      %2211 = vmatmul.mubr.bf16.gmra.mrb[0].mxu0 %v538
      %v2212 = vpop.f32.mrb[0].mxu0
      %v2213 = vadd.f32 0.0, %v2212
      %v2214 = vpop.f32.mrb[0].mxu0
      %v2215 = vpop.f32.mrb[0].mxu0
      %v2216 = vadd.f32 0.0, %v2215
      %v2217 = vpop.f32.mrb[0].mxu0
      %2218 = vmatprep.mubr.bf16.mxu0 0
      %2219 = vmatmul.mubr.bf16.gmra.mrb[0].mxu0 %v541
      %v2220 = vpop.f32.mrb[0].mxu0
      %v2221 = vadd.f32 0.0, %v2220
      %v2222 = vpop.f32.mrb[0].mxu0
      %v2223 = vpop.f32.mrb[0].mxu0
      %v2224 = vadd.f32 0.0, %v2223
      %v2225 = vpop.f32.mrb[0].mxu0
      %2226 = vmatprep.mubr.bf16.mxu0 0
      %2227 = vmatmul.mubr.bf16.gmra.mrb[0].mxu0 %v544
      %v2228 = vpop.f32.mrb[0].mxu0
      %v2229 = vadd.f32 0.0, %v2228
      %v2230 = vpop.f32.mrb[0].mxu0
      %v2231 = vpop.f32.mrb[0].mxu0
      %v2232 = vadd.f32 0.0, %v2231
      %v2233 = vpop.f32.mrb[0].mxu0
      %2234 = vmatprep.mubr.bf16.mxu0 0
      %2235 = vmatmul.mubr.bf16.gmra.mrb[0].mxu0 %v547
      %v2236 = vpop.f32.mrb[0].mxu0
      %v2237 = vadd.f32 0.0, %v2236
      %v2238 = vpop.f32.mrb[0].mxu0
      %v2239 = vpop.f32.mrb[0].mxu0
      %v2240 = vadd.f32 0.0, %v2239
      %v2241 = vpop.f32.mrb[0].mxu0
      %2242 = vmatprep.mubr.bf16.mxu0 0
      %2243 = vmatmul.mubr.bf16.gmra.mrb[0].mxu0 %v550
      %v2244 = vpop.f32.mrb[0].mxu0
      %v2245 = vadd.f32 0.0, %v2244
      %v2246 = vpop.f32.mrb[0].mxu0
      %v2247 = vpop.f32.mrb[0].mxu0
      %v2248 = vadd.f32 0.0, %v2247
      %v2249 = vpop.f32.mrb[0].mxu0
      %2250 = vmatprep.mubr.bf16.mxu0 0
      %2251 = vmatmul.mubr.bf16.gmra.mrb[0].mxu0 %v553
      %v2252 = vpop.f32.mrb[0].mxu0
      %v2253 = vadd.f32 0.0, %v2252
      %v2254 = vpop.f32.mrb[0].mxu0
      %v2255 = vpop.f32.mrb[0].mxu0
      %v2256 = vadd.f32 0.0, %v2255
      %v2257 = vpop.f32.mrb[0].mxu0
      %2258 = vmatprep.mubr.bf16.mxu0 0
      %2259 = vmatmul.mubr.bf16.gmra.mrb[0].mxu0 %v556
      %v2260 = vpop.f32.mrb[0].mxu0
      %v2261 = vadd.f32 0.0, %v2260
      %v2262 = vpop.f32.mrb[0].mxu0
      %v2263 = vpop.f32.mrb[0].mxu0
      %v2264 = vadd.f32 0.0, %v2263
      %v2265 = vpop.f32.mrb[0].mxu0
      %2266 = vmatprep.mubr.bf16.mxu0 0
      %2267 = vmatmul.mubr.bf16.gmra.mrb[0].mxu0 %v559
      %v2268 = vpop.f32.mrb[0].mxu0
      %v2269 = vadd.f32 0.0, %v2268
      %v2270 = vpop.f32.mrb[0].mxu0
      %v2271 = vpop.f32.mrb[0].mxu0
      %v2272 = vadd.f32 0.0, %v2271
      %v2273 = vpop.f32.mrb[0].mxu0
      %2274 = vmatprep.mubr.bf16.mxu0 0
      %2275 = vmatmul.mubr.bf16.gmra.mrb[0].mxu0 %v562
      %v2276 = vpop.f32.mrb[0].mxu0
      %v2277 = vadd.f32 0.0, %v2276
      %v2278 = vpop.f32.mrb[0].mxu0
      %v2279 = vpop.f32.mrb[0].mxu0
      %v2280 = vadd.f32 0.0, %v2279
      %v2281 = vpop.f32.mrb[0].mxu0
      %2282 = vmatprep.mubr.bf16.mxu0 0
      %2283 = vmatmul.mubr.bf16.gmra.mrb[0].mxu0 %v565
      %v2284 = vpop.f32.mrb[0].mxu0
      %v2285 = vadd.f32 0.0, %v2284
      %v2286 = vpop.f32.mrb[0].mxu0
      %v2287 = vpop.f32.mrb[0].mxu0
      %v2288 = vadd.f32 0.0, %v2287
      %v2289 = vpop.f32.mrb[0].mxu0
      %2290 = vmatprep.mubr.bf16.mxu0 0
      %2291 = vmatmul.mubr.bf16.gmra.mrb[0].mxu0 %v568
      %v2292 = vpop.f32.mrb[0].mxu0
      %v2293 = vadd.f32 0.0, %v2292
      %v2294 = vpop.f32.mrb[0].mxu0
      %v2295 = vpop.f32.mrb[0].mxu0
      %v2296 = vadd.f32 0.0, %v2295
      %v2297 = vpop.f32.mrb[0].mxu0
      %2298 = vmatprep.mubr.bf16.mxu0 0
      %2299 = vmatmul.mubr.bf16.gmra.mrb[0].mxu0 %v571
      %v2300 = vpop.f32.mrb[0].mxu0
      %v2301 = vadd.f32 0.0, %v2300
      %v2302 = vpop.f32.mrb[0].mxu0
      %v2303 = vpop.f32.mrb[0].mxu0
      %v2304 = vadd.f32 0.0, %v2303
      %v2305 = vpop.f32.mrb[0].mxu0
      %2306 = vmatprep.mubr.bf16.mxu0 0
      %2307 = vmatmul.mubr.bf16.gmra.mrb[0].mxu0 %v574
      %v2308 = vpop.f32.mrb[0].mxu0
      %v2309 = vadd.f32 0.0, %v2308
      %v2310 = vpop.f32.mrb[0].mxu0
      %v2311 = vpop.f32.mrb[0].mxu0
      %v2312 = vadd.f32 0.0, %v2311
      %v2313 = vpop.f32.mrb[0].mxu0
      %2314 = vmatprep.mubr.bf16.mxu0 0
      %2315 = vmatmul.mubr.bf16.gmra.mrb[0].mxu0 %v577
      %v2316 = vpop.f32.mrb[0].mxu0
      %v2317 = vadd.f32 0.0, %v2316
      %v2318 = vpop.f32.mrb[0].mxu0
      %v2319 = vpop.f32.mrb[0].mxu0
      %v2320 = vadd.f32 0.0, %v2319
      %v2321 = vpop.f32.mrb[0].mxu0
      %2322 = vmatprep.mubr.bf16.mxu0 0
      %2323 = vmatmul.mubr.bf16.gmra.mrb[0].mxu0 %v1550
      %v2324 = vpop.f32.mrb[0].mxu0
      %v2325 = vadd.f32 0.0, %v2324
      %v2326 = vpop.f32.mrb[0].mxu0
      %v2327 = vpop.f32.mrb[0].mxu0
      %v2328 = vadd.f32 0.0, %v2327
      %v2329 = vpop.f32.mrb[0].mxu0
      %2330 = vmatprep.mubr.bf16.mxu0 0
      %2331 = vmatmul.mubr.bf16.gmra.mrb[0].mxu0 %v2173
      %v2332 = vpop.f32.mrb[0].mxu0
      %v2333 = vadd.f32 0.0, %v2332
      %v2334 = vpop.f32.mrb[0].mxu0
      %v2335 = vpop.f32.mrb[0].mxu0
      %v2336 = vadd.f32 0.0, %v2335
      %v2337 = vpop.f32.mrb[0].mxu0
      %2338 = vdwg.mxu0
      %v2339 = vadd.f32 %v2127, %v2213
      %v2340 = vadd.f32 %v2128, %v2216
      %v2341 = vadd.f32 %v2129, %v2221
      %v2342 = vadd.f32 %v2130, %v2224
      %v2343 = vadd.f32 %v2131, %v2229
      %v2344 = vadd.f32 %v2132, %v2232
      %v2345 = vadd.f32 %v2133, %v2237
      %v2346 = vadd.f32 %v2134, %v2240
      %v2347 = vadd.f32 %v2135, %v2245
      %v2348 = vadd.f32 %v2136, %v2248
      %v2349 = vadd.f32 %v2137, %v2253
      %v2350 = vadd.f32 %v2138, %v2256
      %v2351 = vadd.f32 %v2139, %v2261
      %v2352 = vadd.f32 %v2140, %v2264
      %v2353 = vadd.f32 %v2141, %v2269
      %v2354 = vadd.f32 %v2142, %v2272
      %v2355 = vadd.f32 %v2143, %v2277
      %v2356 = vadd.f32 %v2144, %v2280
      %v2357 = vadd.f32 %v2145, %v2285
      %v2358 = vadd.f32 %v2146, %v2288
      %v2359 = vadd.f32 %v2147, %v2293
      %v2360 = vadd.f32 %v2148, %v2296
      %v2361 = vadd.f32 %v2149, %v2301
      %v2362 = vadd.f32 %v2150, %v2304
      %v2363 = vadd.f32 %v2151, %v2309
      %v2364 = vadd.f32 %v2152, %v2312
      %v2365 = vadd.f32 %v2153, %v2317
      %v2366 = vadd.f32 %v2154, %v2320
      %v2367 = vadd.f32 %v2155, %v2325
      %v2368 = vadd.f32 %v2156, %v2328
      %v2369 = vadd.f32 %v2157, %v2333
      %v2370 = vadd.f32 %v2158, %v2336
      %v2371 = vrot.slane %v331, 2
      %v2372 = vrot.slane %v332, 2
      %v2373 = vsel %vm959, %v2371, %v2372
      %v2374 = vrot.slane %v333, 2
      %v2375 = vsel %vm959, %v2372, %v2374
      %v2378 = vpack.c.bf16 %v2375, %v2373
      %s2379 = scalar_lea.vmem %s1, 16
      %v2380 = vld [vmem:[%s2379] sm:$0x3]
      %v2382 = vsel %vm530, %v2378, 0
      %v2385 = vand.u32 %v2380, %v582
      %2387 = vmatprep.subr.bf16.mxu0 0
      %2388 = vmatpush1.bf16.msra.mxu0 %v2385
      %2389 = vmatprep.subr.bf16.mxu0 0
      %2390 = vmatpush1.bf16.msra.mxu0 0
      %2391 = vmatprep.subr.bf16.mxu0 0
      %2392 = vmatpush1.bf16.msra.mxu0 0
      %2393 = vmatprep.subr.bf16.mxu0 0
      %2394 = vmatpush1.bf16.msra.mxu0 0
      %2395 = vmatprep.subr.bf16.mxu0 0
      %2396 = vmatpush1.bf16.msra.mxu0 0
      %2397 = vmatprep.subr.bf16.mxu0 0
      %2398 = vmatpush1.bf16.msra.mxu0 0
      %2399 = vmatprep.subr.bf16.mxu0 0
      %2400 = vmatpush1.bf16.msra.mxu0 0
      %2401 = vmatprep.subr.bf16.mxu0 0
      %2402 = vmatpush1.bf16.msra.mxu0 0
      %2403 = vmatprep.subr.bf16.mxu0 0
      %2404 = vmatpush1.bf16.msra.mxu0 0
      %2405 = vmatprep.subr.bf16.mxu0 0
      %2406 = vmatpush1.bf16.msra.mxu0 0
      %2407 = vmatprep.subr.bf16.mxu0 0
      %2408 = vmatpush1.bf16.msra.mxu0 0
      %2409 = vmatprep.subr.bf16.mxu0 0
      %2410 = vmatpush1.bf16.msra.mxu0 0
      %2411 = vmatprep.subr.bf16.mxu0 0
      %2412 = vmatpush1.bf16.msra.mxu0 0
      %2413 = vmatprep.subr.bf16.mxu0 0
      %2414 = vmatpush1.bf16.msra.mxu0 0
      %2415 = vmatprep.subr.bf16.mxu0 0
      %2416 = vmatpush1.bf16.msra.mxu0 0
      %2417 = vmatprep.subr.bf16.mxu0 0
      %2418 = vmatpush1.bf16.msra.mxu0 0
      %2419 = vmatprep.mubr.bf16.mxu0 0
      %2420 = vmatmul.mubr.bf16.gmra.mrb[0].mxu0 %v1097
      %v2421 = vpop.f32.mrb[0].mxu0
      %v2422 = vadd.f32 0.0, %v2421
      %v2423 = vpop.f32.mrb[0].mxu0
      %v2424 = vpop.f32.mrb[0].mxu0
      %v2425 = vadd.f32 0.0, %v2424
      %v2426 = vpop.f32.mrb[0].mxu0
      %2427 = vmatprep.mubr.bf16.mxu0 0
      %2428 = vmatmul.mubr.bf16.gmra.mrb[0].mxu0 %v1100
      %v2429 = vpop.f32.mrb[0].mxu0
      %v2430 = vadd.f32 0.0, %v2429
      %v2431 = vpop.f32.mrb[0].mxu0
      %v2432 = vpop.f32.mrb[0].mxu0
      %v2433 = vadd.f32 0.0, %v2432
      %v2434 = vpop.f32.mrb[0].mxu0
      %2435 = vmatprep.mubr.bf16.mxu0 0
      %2436 = vmatmul.mubr.bf16.gmra.mrb[0].mxu0 %v1103
      %v2437 = vpop.f32.mrb[0].mxu0
      %v2438 = vadd.f32 0.0, %v2437
      %v2439 = vpop.f32.mrb[0].mxu0
      %v2440 = vpop.f32.mrb[0].mxu0
      %v2441 = vadd.f32 0.0, %v2440
      %v2442 = vpop.f32.mrb[0].mxu0
      %2443 = vmatprep.mubr.bf16.mxu0 0
      %2444 = vmatmul.mubr.bf16.gmra.mrb[0].mxu0 %v1106
      %v2445 = vpop.f32.mrb[0].mxu0
      %v2446 = vadd.f32 0.0, %v2445
      %v2447 = vpop.f32.mrb[0].mxu0
      %v2448 = vpop.f32.mrb[0].mxu0
      %v2449 = vadd.f32 0.0, %v2448
      %v2450 = vpop.f32.mrb[0].mxu0
      %2451 = vmatprep.mubr.bf16.mxu0 0
      %2452 = vmatmul.mubr.bf16.gmra.mrb[0].mxu0 %v1109
      %v2453 = vpop.f32.mrb[0].mxu0
      %v2454 = vadd.f32 0.0, %v2453
      %v2455 = vpop.f32.mrb[0].mxu0
      %v2456 = vpop.f32.mrb[0].mxu0
      %v2457 = vadd.f32 0.0, %v2456
      %v2458 = vpop.f32.mrb[0].mxu0
      %2459 = vmatprep.mubr.bf16.mxu0 0
      %2460 = vmatmul.mubr.bf16.gmra.mrb[0].mxu0 %v1112
      %v2461 = vpop.f32.mrb[0].mxu0
      %v2462 = vadd.f32 0.0, %v2461
      %v2463 = vpop.f32.mrb[0].mxu0
      %v2464 = vpop.f32.mrb[0].mxu0
      %v2465 = vadd.f32 0.0, %v2464
      %v2466 = vpop.f32.mrb[0].mxu0
      %2467 = vmatprep.mubr.bf16.mxu0 0
      %2468 = vmatmul.mubr.bf16.gmra.mrb[0].mxu0 %v1115
      %v2469 = vpop.f32.mrb[0].mxu0
      %v2470 = vadd.f32 0.0, %v2469
      %v2471 = vpop.f32.mrb[0].mxu0
      %v2472 = vpop.f32.mrb[0].mxu0
      %v2473 = vadd.f32 0.0, %v2472
      %v2474 = vpop.f32.mrb[0].mxu0
      %2475 = vmatprep.mubr.bf16.mxu0 0
      %2476 = vmatmul.mubr.bf16.gmra.mrb[0].mxu0 %v1118
      %v2477 = vpop.f32.mrb[0].mxu0
      %v2478 = vadd.f32 0.0, %v2477
      %v2479 = vpop.f32.mrb[0].mxu0
      %v2480 = vpop.f32.mrb[0].mxu0
      %v2481 = vadd.f32 0.0, %v2480
      %v2482 = vpop.f32.mrb[0].mxu0
      %2483 = vmatprep.mubr.bf16.mxu0 0
      %2484 = vmatmul.mubr.bf16.gmra.mrb[0].mxu0 %v1121
      %v2485 = vpop.f32.mrb[0].mxu0
      %v2486 = vadd.f32 0.0, %v2485
      %v2487 = vpop.f32.mrb[0].mxu0
      %v2488 = vpop.f32.mrb[0].mxu0
      %v2489 = vadd.f32 0.0, %v2488
      %v2490 = vpop.f32.mrb[0].mxu0
      %2491 = vmatprep.mubr.bf16.mxu0 0
      %2492 = vmatmul.mubr.bf16.gmra.mrb[0].mxu0 %v1124
      %v2493 = vpop.f32.mrb[0].mxu0
      %v2494 = vadd.f32 0.0, %v2493
      %v2495 = vpop.f32.mrb[0].mxu0
      %v2496 = vpop.f32.mrb[0].mxu0
      %v2497 = vadd.f32 0.0, %v2496
      %v2498 = vpop.f32.mrb[0].mxu0
      %2499 = vmatprep.mubr.bf16.mxu0 0
      %2500 = vmatmul.mubr.bf16.gmra.mrb[0].mxu0 %v1127
      %v2501 = vpop.f32.mrb[0].mxu0
      %v2502 = vadd.f32 0.0, %v2501
      %v2503 = vpop.f32.mrb[0].mxu0
      %v2504 = vpop.f32.mrb[0].mxu0
      %v2505 = vadd.f32 0.0, %v2504
      %v2506 = vpop.f32.mrb[0].mxu0
      %2507 = vmatprep.mubr.bf16.mxu0 0
      %2508 = vmatmul.mubr.bf16.gmra.mrb[0].mxu0 %v1130
      %v2509 = vpop.f32.mrb[0].mxu0
      %v2510 = vadd.f32 0.0, %v2509
      %v2511 = vpop.f32.mrb[0].mxu0
      %v2512 = vpop.f32.mrb[0].mxu0
      %v2513 = vadd.f32 0.0, %v2512
      %v2514 = vpop.f32.mrb[0].mxu0
      %2515 = vmatprep.mubr.bf16.mxu0 0
      %2516 = vmatmul.mubr.bf16.gmra.mrb[0].mxu0 %v1133
      %v2517 = vpop.f32.mrb[0].mxu0
      %v2518 = vadd.f32 0.0, %v2517
      %v2519 = vpop.f32.mrb[0].mxu0
      %v2520 = vpop.f32.mrb[0].mxu0
      %v2521 = vadd.f32 0.0, %v2520
      %v2522 = vpop.f32.mrb[0].mxu0
      %2523 = vmatprep.mubr.bf16.mxu0 0
      %2524 = vmatmul.mubr.bf16.gmra.mrb[0].mxu0 %v1136
      %v2525 = vpop.f32.mrb[0].mxu0
      %v2526 = vadd.f32 0.0, %v2525
      %v2527 = vpop.f32.mrb[0].mxu0
      %v2528 = vpop.f32.mrb[0].mxu0
      %v2529 = vadd.f32 0.0, %v2528
      %v2530 = vpop.f32.mrb[0].mxu0
      %2531 = vmatprep.mubr.bf16.mxu0 0
      %2532 = vmatmul.mubr.bf16.gmra.mrb[0].mxu0 %v1759
      %v2533 = vpop.f32.mrb[0].mxu0
      %v2534 = vadd.f32 0.0, %v2533
      %v2535 = vpop.f32.mrb[0].mxu0
      %v2536 = vpop.f32.mrb[0].mxu0
      %v2537 = vadd.f32 0.0, %v2536
      %v2538 = vpop.f32.mrb[0].mxu0
      %2539 = vmatprep.mubr.bf16.mxu0 0
      %2540 = vmatmul.mubr.bf16.gmra.mrb[0].mxu0 %v2382
      %v2541 = vpop.f32.mrb[0].mxu0
      %v2542 = vadd.f32 0.0, %v2541
      %v2543 = vpop.f32.mrb[0].mxu0
      %v2544 = vpop.f32.mrb[0].mxu0
      %v2545 = vadd.f32 0.0, %v2544
      %v2546 = vpop.f32.mrb[0].mxu0
      %2547 = vdwg.mxu0
      %v2548 = vadd.f32 %v2339, %v2422
      %v2549 = vadd.f32 %v2340, %v2425
      %v2550 = vadd.f32 %v2341, %v2430
      %v2551 = vadd.f32 %v2342, %v2433
      %v2552 = vadd.f32 %v2343, %v2438
      %v2553 = vadd.f32 %v2344, %v2441
      %v2554 = vadd.f32 %v2345, %v2446
      %v2555 = vadd.f32 %v2346, %v2449
      %v2556 = vadd.f32 %v2347, %v2454
      %v2557 = vadd.f32 %v2348, %v2457
      %v2558 = vadd.f32 %v2349, %v2462
      %v2559 = vadd.f32 %v2350, %v2465
      %v2560 = vadd.f32 %v2351, %v2470
      %v2561 = vadd.f32 %v2352, %v2473
      %v2562 = vadd.f32 %v2353, %v2478
      %v2563 = vadd.f32 %v2354, %v2481
      %v2564 = vadd.f32 %v2355, %v2486
      %v2565 = vadd.f32 %v2356, %v2489
      %v2566 = vadd.f32 %v2357, %v2494
      %v2567 = vadd.f32 %v2358, %v2497
      %v2568 = vadd.f32 %v2359, %v2502
      %v2569 = vadd.f32 %v2360, %v2505
      %v2570 = vadd.f32 %v2361, %v2510
      %v2571 = vadd.f32 %v2362, %v2513
      %v2572 = vadd.f32 %v2363, %v2518
      %v2573 = vadd.f32 %v2364, %v2521
      %v2574 = vadd.f32 %v2365, %v2526
      %v2575 = vadd.f32 %v2366, %v2529
      %v2576 = vadd.f32 %v2367, %v2534
      %v2577 = vadd.f32 %v2368, %v2537
      %v2578 = vadd.f32 %v2369, %v2542
      %v2579 = vadd.f32 %v2370, %v2545
      %v2580 = vld [vmem:[%s2] sm:$0x1]
      %v2582 = vlaneseq
      %v2583 = vshrl.u32 %v2582, 7
      %v2584 = vsub.s32 0, %v2583
      %v2585 = vrot.slane %v2580, %v2584
      %v2587 = vadd.f32 %v2548, %v2585
      %v2588 = vadd.f32 %v2549, %v2585
      %v2589 = vadd.f32 %v2550, %v2585
      %v2590 = vadd.f32 %v2551, %v2585
      %v2591 = vadd.f32 %v2552, %v2585
      %v2592 = vadd.f32 %v2553, %v2585
      %v2593 = vadd.f32 %v2554, %v2585
      %v2594 = vadd.f32 %v2555, %v2585
      %v2595 = vadd.f32 %v2556, %v2585
      %v2596 = vadd.f32 %v2557, %v2585
      %v2597 = vadd.f32 %v2558, %v2585
      %v2598 = vadd.f32 %v2559, %v2585
      %v2599 = vadd.f32 %v2560, %v2585
      %v2600 = vadd.f32 %v2561, %v2585
      %v2601 = vadd.f32 %v2562, %v2585
      %v2602 = vadd.f32 %v2563, %v2585
      %v2603 = vadd.f32 %v2564, %v2585
      %v2604 = vadd.f32 %v2565, %v2585
      %v2605 = vadd.f32 %v2566, %v2585
      %v2606 = vadd.f32 %v2567, %v2585
      %v2607 = vadd.f32 %v2568, %v2585
      %v2608 = vadd.f32 %v2569, %v2585
      %v2609 = vadd.f32 %v2570, %v2585
      %v2610 = vadd.f32 %v2571, %v2585
      %v2611 = vadd.f32 %v2572, %v2585
      %v2612 = vadd.f32 %v2573, %v2585
      %v2613 = vadd.f32 %v2574, %v2585
      %v2614 = vadd.f32 %v2575, %v2585
      %v2615 = vadd.f32 %v2576, %v2585
      %v2616 = vadd.f32 %v2577, %v2585
      %v2617 = vadd.f32 %v2578, %v2585
      %v2618 = vadd.f32 %v2579, %v2585
      %v2619 = vmax.f32 %v2587, 0.0
      %v2620 = vmax.f32 %v2588, 0.0
      %v2621 = vmax.f32 %v2589, 0.0
      %v2622 = vmax.f32 %v2590, 0.0
      %v2623 = vmax.f32 %v2591, 0.0
      %v2624 = vmax.f32 %v2592, 0.0
      %v2625 = vmax.f32 %v2593, 0.0
      %v2626 = vmax.f32 %v2594, 0.0
      %v2627 = vmax.f32 %v2595, 0.0
      %v2628 = vmax.f32 %v2596, 0.0
      %v2629 = vmax.f32 %v2597, 0.0
      %v2630 = vmax.f32 %v2598, 0.0
      %v2631 = vmax.f32 %v2599, 0.0
      %v2632 = vmax.f32 %v2600, 0.0
      %v2633 = vmax.f32 %v2601, 0.0
      %v2634 = vmax.f32 %v2602, 0.0
      %v2635 = vmax.f32 %v2603, 0.0
      %v2636 = vmax.f32 %v2604, 0.0
      %v2637 = vmax.f32 %v2605, 0.0
      %v2638 = vmax.f32 %v2606, 0.0
      %v2639 = vmax.f32 %v2607, 0.0
      %v2640 = vmax.f32 %v2608, 0.0
      %v2641 = vmax.f32 %v2609, 0.0
      %v2642 = vmax.f32 %v2610, 0.0
      %v2643 = vmax.f32 %v2611, 0.0
      %v2644 = vmax.f32 %v2612, 0.0
      %v2645 = vmax.f32 %v2613, 0.0
      %v2646 = vmax.f32 %v2614, 0.0
      %v2647 = vmax.f32 %v2615, 0.0
      %v2648 = vmax.f32 %v2616, 0.0
      %v2649 = vmax.f32 %v2617, 0.0
      %v2650 = vmax.f32 %v2618, 0.0
      %v2651 = vpack.c.bf16 %v2620, %v2619
      %v2652 = vpack.c.bf16 %v2622, %v2621
      %v2653 = vpack.c.bf16 %v2624, %v2623
      %v2654 = vpack.c.bf16 %v2626, %v2625
      %v2655 = vpack.c.bf16 %v2628, %v2627
      %v2656 = vpack.c.bf16 %v2630, %v2629
      %v2657 = vpack.c.bf16 %v2632, %v2631
      %v2658 = vpack.c.bf16 %v2634, %v2633
      %v2659 = vpack.c.bf16 %v2636, %v2635
      %v2660 = vpack.c.bf16 %v2638, %v2637
      %v2661 = vpack.c.bf16 %v2640, %v2639
      %v2662 = vpack.c.bf16 %v2642, %v2641
      %v2663 = vpack.c.bf16 %v2644, %v2643
      %v2664 = vpack.c.bf16 %v2646, %v2645
      %v2665 = vpack.c.bf16 %v2648, %v2647
      %v2666 = vpack.c.bf16 %v2650, %v2649
      %v2667 = vld [vmem:[%s3] sm:$0xf]
      %v2668 = vld [vmem:[%s3 + $0x4] sm:$0xf]
      %v2669 = vld [vmem:[%s3 + $0x8] sm:$0xf]
      %v2670 = vld [vmem:[%s3 + $0xc] sm:$0xf]
      %v2671 = vld [vmem:[%s3 + $0x10] sm:$0xf]
      %v2672 = vld [vmem:[%s3 + $0x14] sm:$0xf]
      %v2673 = vld [vmem:[%s3 + $0x18] sm:$0xf]
      %v2674 = vld [vmem:[%s3 + $0x1c] sm:$0xf]
      %v2675 = vld [vmem:[%s4] sm:$0x1]
      %v2677 = vlaneseq
      %v2678 = vshrl.u32 %v2677, 7
      %v2679 = vsub.s32 0, %v2678
      %v2680 = vrot.slane %v2675, %v2679
      %v2690 = vunpack.c.l.b16 %v2667
      %v2691 = vunpack.c.l.b16 %v2668
      %v2692 = vunpack.c.l.b16 %v2669
      %v2693 = vunpack.c.l.b16 %v2670
      %v2694 = vunpack.c.l.b16 %v2671
      %v2695 = vunpack.c.l.b16 %v2672
      %v2696 = vunpack.c.l.b16 %v2673
      %v2697 = vunpack.c.l.b16 %v2674
      %v2698 = vpack.c.b16 %v2691, %v2690
      %v2699 = vpack.c.b16 %v2693, %v2692
      %v2700 = vpack.c.b16 %v2695, %v2694
      %v2701 = vpack.c.b16 %v2697, %v2696
      %vm2706 = vcmask 523264
      %v2708 = vsel %vm2706, %v2651, 0
      %v2711 = vsel %vm2706, %v2652, 0
      %v2714 = vsel %vm2706, %v2653, 0
      %v2717 = vsel %vm2706, %v2654, 0
      %v2720 = vsel %vm2706, %v2655, 0
      %v2723 = vsel %vm2706, %v2656, 0
      %v2726 = vsel %vm2706, %v2657, 0
      %v2729 = vsel %vm2706, %v2658, 0
      %v2732 = vsel %vm2706, %v2659, 0
      %v2735 = vsel %vm2706, %v2660, 0
      %v2738 = vsel %vm2706, %v2661, 0
      %v2741 = vsel %vm2706, %v2662, 0
      %v2744 = vsel %vm2706, %v2663, 0
      %v2747 = vsel %vm2706, %v2664, 0
      %v2750 = vsel %vm2706, %v2665, 0
      %v2753 = vsel %vm2706, %v2666, 0
      %2755 = vmatprep.subr.bf16.mxu0 0
      %2756 = vmatpush1.bf16.msra.mxu0 %v2698
      %2757 = vmatprep.subr.bf16.mxu0 0
      %2758 = vmatpush1.bf16.msra.mxu0 %v2699
      %2759 = vmatprep.subr.bf16.mxu0 0
      %2760 = vmatpush1.bf16.msra.mxu0 %v2700
      %2761 = vmatprep.subr.bf16.mxu0 0
      %2762 = vmatpush1.bf16.msra.mxu0 %v2701
      %2763 = vmatprep.subr.bf16.mxu0 0
      %2764 = vmatpush1.bf16.msra.mxu0 0
      %2765 = vmatprep.subr.bf16.mxu0 0
      %2766 = vmatpush1.bf16.msra.mxu0 0
      %2767 = vmatprep.subr.bf16.mxu0 0
      %2768 = vmatpush1.bf16.msra.mxu0 0
      %2769 = vmatprep.subr.bf16.mxu0 0
      %2770 = vmatpush1.bf16.msra.mxu0 0
      %2771 = vmatprep.subr.bf16.mxu0 0
      %2772 = vmatpush1.bf16.msra.mxu0 0
      %2773 = vmatprep.subr.bf16.mxu0 0
      %2774 = vmatpush1.bf16.msra.mxu0 0
      %2775 = vmatprep.subr.bf16.mxu0 0
      %2776 = vmatpush1.bf16.msra.mxu0 0
      %2777 = vmatprep.subr.bf16.mxu0 0
      %2778 = vmatpush1.bf16.msra.mxu0 0
      %2779 = vmatprep.subr.bf16.mxu0 0
      %2780 = vmatpush1.bf16.msra.mxu0 0
      %2781 = vmatprep.subr.bf16.mxu0 0
      %2782 = vmatpush1.bf16.msra.mxu0 0
      %2783 = vmatprep.subr.bf16.mxu0 0
      %2784 = vmatpush1.bf16.msra.mxu0 0
      %2785 = vmatprep.subr.bf16.mxu0 0
      %2786 = vmatpush1.bf16.msra.mxu0 0
      %2787 = vmatprep.mubr.bf16.mxu0 0
      %2788 = vmatmul.mubr.bf16.gmra.mrb[0].mxu0 %v2708
      %v2789 = vpop.f32.mrb[0].mxu0
      %v2790 = vadd.f32 %v2680, %v2789
      %v2791 = vpop.f32.mrb[0].mxu0
      %v2792 = vpop.f32.mrb[0].mxu0
      %v2793 = vadd.f32 %v2680, %v2792
      %v2794 = vpop.f32.mrb[0].mxu0
      %2795 = vmatprep.mubr.bf16.mxu0 0
      %2796 = vmatmul.mubr.bf16.gmra.mrb[0].mxu0 %v2711
      %v2797 = vpop.f32.mrb[0].mxu0
      %v2798 = vadd.f32 %v2680, %v2797
      %v2799 = vpop.f32.mrb[0].mxu0
      %v2800 = vpop.f32.mrb[0].mxu0
      %v2801 = vadd.f32 %v2680, %v2800
      %v2802 = vpop.f32.mrb[0].mxu0
      %2803 = vmatprep.mubr.bf16.mxu0 0
      %2804 = vmatmul.mubr.bf16.gmra.mrb[0].mxu0 %v2714
      %v2805 = vpop.f32.mrb[0].mxu0
      %v2806 = vadd.f32 %v2680, %v2805
      %v2807 = vpop.f32.mrb[0].mxu0
      %v2808 = vpop.f32.mrb[0].mxu0
      %v2809 = vadd.f32 %v2680, %v2808
      %v2810 = vpop.f32.mrb[0].mxu0
      %2811 = vmatprep.mubr.bf16.mxu0 0
      %2812 = vmatmul.mubr.bf16.gmra.mrb[0].mxu0 %v2717
      %v2813 = vpop.f32.mrb[0].mxu0
      %v2814 = vadd.f32 %v2680, %v2813
      %v2815 = vpop.f32.mrb[0].mxu0
      %v2816 = vpop.f32.mrb[0].mxu0
      %v2817 = vadd.f32 %v2680, %v2816
      %v2818 = vpop.f32.mrb[0].mxu0
      %2819 = vmatprep.mubr.bf16.mxu0 0
      %2820 = vmatmul.mubr.bf16.gmra.mrb[0].mxu0 %v2720
      %v2821 = vpop.f32.mrb[0].mxu0
      %v2822 = vadd.f32 %v2680, %v2821
      %v2823 = vpop.f32.mrb[0].mxu0
      %v2824 = vpop.f32.mrb[0].mxu0
      %v2825 = vadd.f32 %v2680, %v2824
      %v2826 = vpop.f32.mrb[0].mxu0
      %2827 = vmatprep.mubr.bf16.mxu0 0
      %2828 = vmatmul.mubr.bf16.gmra.mrb[0].mxu0 %v2723
      %v2829 = vpop.f32.mrb[0].mxu0
      %v2830 = vadd.f32 %v2680, %v2829
      %v2831 = vpop.f32.mrb[0].mxu0
      %v2832 = vpop.f32.mrb[0].mxu0
      %v2833 = vadd.f32 %v2680, %v2832
      %v2834 = vpop.f32.mrb[0].mxu0
      %2835 = vmatprep.mubr.bf16.mxu0 0
      %2836 = vmatmul.mubr.bf16.gmra.mrb[0].mxu0 %v2726
      %v2837 = vpop.f32.mrb[0].mxu0
      %v2838 = vadd.f32 %v2680, %v2837
      %v2839 = vpop.f32.mrb[0].mxu0
      %v2840 = vpop.f32.mrb[0].mxu0
      %v2841 = vadd.f32 %v2680, %v2840
      %v2842 = vpop.f32.mrb[0].mxu0
      %2843 = vmatprep.mubr.bf16.mxu0 0
      %2844 = vmatmul.mubr.bf16.gmra.mrb[0].mxu0 %v2729
      %v2845 = vpop.f32.mrb[0].mxu0
      %v2846 = vadd.f32 %v2680, %v2845
      %v2847 = vpop.f32.mrb[0].mxu0
      %v2848 = vpop.f32.mrb[0].mxu0
      %v2849 = vadd.f32 %v2680, %v2848
      %v2850 = vpop.f32.mrb[0].mxu0
      %2851 = vmatprep.mubr.bf16.mxu0 0
      %2852 = vmatmul.mubr.bf16.gmra.mrb[0].mxu0 %v2732
      %v2853 = vpop.f32.mrb[0].mxu0
      %v2854 = vadd.f32 %v2680, %v2853
      %v2855 = vpop.f32.mrb[0].mxu0
      %v2856 = vpop.f32.mrb[0].mxu0
      %v2857 = vadd.f32 %v2680, %v2856
      %v2858 = vpop.f32.mrb[0].mxu0
      %2859 = vmatprep.mubr.bf16.mxu0 0
      %2860 = vmatmul.mubr.bf16.gmra.mrb[0].mxu0 %v2735
      %v2861 = vpop.f32.mrb[0].mxu0
      %v2862 = vadd.f32 %v2680, %v2861
      %v2863 = vpop.f32.mrb[0].mxu0
      %v2864 = vpop.f32.mrb[0].mxu0
      %v2865 = vadd.f32 %v2680, %v2864
      %v2866 = vpop.f32.mrb[0].mxu0
      %2867 = vmatprep.mubr.bf16.mxu0 0
      %2868 = vmatmul.mubr.bf16.gmra.mrb[0].mxu0 %v2738
      %v2869 = vpop.f32.mrb[0].mxu0
      %v2870 = vadd.f32 %v2680, %v2869
      %v2871 = vpop.f32.mrb[0].mxu0
      %v2872 = vpop.f32.mrb[0].mxu0
      %v2873 = vadd.f32 %v2680, %v2872
      %v2874 = vpop.f32.mrb[0].mxu0
      %2875 = vmatprep.mubr.bf16.mxu0 0
      %2876 = vmatmul.mubr.bf16.gmra.mrb[0].mxu0 %v2741
      %v2877 = vpop.f32.mrb[0].mxu0
      %v2878 = vadd.f32 %v2680, %v2877
      %v2879 = vpop.f32.mrb[0].mxu0
      %v2880 = vpop.f32.mrb[0].mxu0
      %v2881 = vadd.f32 %v2680, %v2880
      %v2882 = vpop.f32.mrb[0].mxu0
      %2883 = vmatprep.mubr.bf16.mxu0 0
      %2884 = vmatmul.mubr.bf16.gmra.mrb[0].mxu0 %v2744
      %v2885 = vpop.f32.mrb[0].mxu0
      %v2886 = vadd.f32 %v2680, %v2885
      %v2887 = vpop.f32.mrb[0].mxu0
      %v2888 = vpop.f32.mrb[0].mxu0
      %v2889 = vadd.f32 %v2680, %v2888
      %v2890 = vpop.f32.mrb[0].mxu0
      %2891 = vmatprep.mubr.bf16.mxu0 0
      %2892 = vmatmul.mubr.bf16.gmra.mrb[0].mxu0 %v2747
      %v2893 = vpop.f32.mrb[0].mxu0
      %v2894 = vadd.f32 %v2680, %v2893
      %v2895 = vpop.f32.mrb[0].mxu0
      %v2896 = vpop.f32.mrb[0].mxu0
      %v2897 = vadd.f32 %v2680, %v2896
      %v2898 = vpop.f32.mrb[0].mxu0
      %2899 = vmatprep.mubr.bf16.mxu0 0
      %2900 = vmatmul.mubr.bf16.gmra.mrb[0].mxu0 %v2750
      %v2901 = vpop.f32.mrb[0].mxu0
      %v2902 = vadd.f32 %v2680, %v2901
      %v2903 = vpop.f32.mrb[0].mxu0
      %v2904 = vpop.f32.mrb[0].mxu0
      %v2905 = vadd.f32 %v2680, %v2904
      %v2906 = vpop.f32.mrb[0].mxu0
      %2907 = vmatprep.mubr.bf16.mxu0 0
      %2908 = vmatmul.mubr.bf16.gmra.mrb[0].mxu0 %v2753
      %v2909 = vpop.f32.mrb[0].mxu0
      %v2910 = vadd.f32 %v2680, %v2909
      %v2911 = vpop.f32.mrb[0].mxu0
      %v2912 = vpop.f32.mrb[0].mxu0
      %v2913 = vadd.f32 %v2680, %v2912
      %v2914 = vpop.f32.mrb[0].mxu0
      %2915 = vdwg.mxu0
      %2916 = vst [vmem:[%s224] sm:$0xff] %v2790
      %2917 = vst [vmem:[%s224 + $0x8] sm:$0xff] %v2793
      %2918 = vst [vmem:[%s224 + $0x10] sm:$0xff] %v2798
      %2919 = vst [vmem:[%s224 + $0x18] sm:$0xff] %v2801
      %2920 = vst [vmem:[%s224 + $0x20] sm:$0xff] %v2806
      %2921 = vst [vmem:[%s224 + $0x28] sm:$0xff] %v2809
      %2922 = vst [vmem:[%s224 + $0x30] sm:$0xff] %v2814
      %2923 = vst [vmem:[%s224 + $0x38] sm:$0xff] %v2817
      %2924 = vst [vmem:[%s224 + $0x40] sm:$0xff] %v2822
      %2925 = vst [vmem:[%s224 + $0x48] sm:$0xff] %v2825
      %2926 = vst [vmem:[%s224 + $0x50] sm:$0xff] %v2830
      %2927 = vst [vmem:[%s224 + $0x58] sm:$0xff] %v2833
      %2928 = vst [vmem:[%s224 + $0x60] sm:$0xff] %v2838
      %2929 = vst [vmem:[%s224 + $0x68] sm:$0xff] %v2841
      %2930 = vst [vmem:[%s224 + $0x70] sm:$0xff] %v2846
      %2931 = vst [vmem:[%s224 + $0x78] sm:$0xff] %v2849
      %2932 = vst [vmem:[%s224 + $0x80] sm:$0xff] %v2854
      %2933 = vst [vmem:[%s224 + $0x88] sm:$0xff] %v2857
      %2934 = vst [vmem:[%s224 + $0x90] sm:$0xff] %v2862
      %2935 = vst [vmem:[%s224 + $0x98] sm:$0xff] %v2865
      %2936 = vst [vmem:[%s224 + $0xa0] sm:$0xff] %v2870
      %2937 = vst [vmem:[%s224 + $0xa8] sm:$0xff] %v2873
      %2938 = vst [vmem:[%s224 + $0xb0] sm:$0xff] %v2878
      %2939 = vst [vmem:[%s224 + $0xb8] sm:$0xff] %v2881
      %2940 = vst [vmem:[%s224 + $0xc0] sm:$0xff] %v2886
      %2941 = vst [vmem:[%s224 + $0xc8] sm:$0xff] %v2889
      %2942 = vst [vmem:[%s224 + $0xd0] sm:$0xff] %v2894
      %2943 = vst [vmem:[%s224 + $0xd8] sm:$0xff] %v2897
      %2944 = vst [vmem:[%s224 + $0xe0] sm:$0xff] %v2902
      %2945 = vst [vmem:[%s224 + $0xe8] sm:$0xff] %v2905
      %2946 = vst [vmem:[%s224 + $0xf0] sm:$0xff] %v2910
      %2947 = vst [vmem:[%s224 + $0xf8] sm:$0xff] %v2913
      %p2948 = scmp.lt.s32.totalorder %s16, 1
      %s2949 = scalar_select %p2948, %s16, 1
      %s2950 = smul.addr %s2949, 32
      %s2951 = smul.addr %s2950, 8
      %s2952 = scalar_lea.vmem %s5, %s2951
      // Predicated region
      $region41: #{fcos_forward_onnx.1} parent=39 // pred_check
        %p2953 = pneg %p144
      $region42: #{fcos_forward_onnx.1} parent=39 // pred_check_branch
        %2955 = sbr.rel (%p2953) target = $region44
      $region43: #{fcos_forward_onnx.1} parent=39 // pred_region
        _
      $region44: #{fcos_forward_onnx.1} parent=39 // pred_fallthru
        _
    $region40: #{fcos_forward_onnx.1} parent=5 // pred_fallthru
      _
    %p2956 = scmp.le.s32.totalorder 2, %s11
    // Predicated region
    $region45: #{fcos_forward_onnx.1} parent=5 // pred_check
      %p2957 = pneg %p2956
    $region46: #{fcos_forward_onnx.1} parent=5 // pred_check_branch
      %2959 = sbr.rel (%p2957) target = $region48
    $region47: #{fcos_forward_onnx.1} parent=5 // pred_region
      %s2960 = ssub.s32 %s11, 2
      // Predicated region
      $region49: #{fcos_forward_onnx.1} parent=47 // pred_check
        %p2961 = pneg %p150
      $region50: #{fcos_forward_onnx.1} parent=47 // pred_check_branch
        %2963 = sbr.rel (%p2961) target = $region52
      $region51: #{fcos_forward_onnx.1} parent=47 // pred_region
        %p2964 = scmp.lt.s32.totalorder %s17, 1
        %s2965 = scalar_select %p2964, %s17, 1
        %s2966 = smul.addr %s2965, 32
        %s2967 = smul.addr %s2966, 8
        %s2968 = scalar_lea.vmem %s5, %s2967
      $region52: #{fcos_forward_onnx.1} parent=47 // pred_fallthru
        _
    $region48: #{fcos_forward_onnx.1} parent=5 // pred_fallthru
      _
  $region6: #{fcos_forward_onnx.1} parent=0 // loop_footer
    %s15 = sadd.s32 1, %s11
  $region7: #{fcos_forward_onnx.1} parent=0 // loop_footer_branch
    %10 = sbr.rel target = $region3
  $region8: #{fcos_forward_onnx.1} parent=0 // loop_exit
    _

</llo_original>
